<compile_context>
chip_gen: v7x
topology: tpu7x:2x2x1
jax: 0.10.0
libtpu: 0.0.40
codegen_flags: <defaults>
</compile_context>

<pallas_src>
import functools

import jax
import jax.numpy as jnp
from jax import lax
from jax.experimental import pallas as pl
from jax.experimental.pallas import tpu as pltpu


def _round_up(v, m):
    return -(-v // m) * m


# ------------------------------ fused kernel --------------------------------


def _inception_kernel(x_ref, wsh_ref, bsh_ref, wbig_ref, bbig_ref, o_ref,
                      pad_ref, patch_ref, *, H, W, nb, cin, c1, gsz, margin):
    L = nb * H * W
    hwp = pad_ref.shape[1]
    nrow = gsz + cin                       # used rows of pad_ref
    c0 = margin                            # lane offset of the image centers

    x = x_ref[...]                         # (cin, L), images interleaved in lanes

    # ---- stage 1: all three x-consuming 1x1 convs in ONE matmul -------------
    # wsh rows: [w3x3-reduce (cr3) ; w5x5-reduce (cr5) ; zero filler ; w1x1 (c1)]
    y = jnp.dot(wsh_ref[...], x, preferred_element_type=jnp.float32)
    y = jnp.maximum(y + bsh_ref[...], 0.0)                   # (gsz + c1, L)

    # branch-1 output: 8-row-aligned slice straight into the output block.
    o_ref[0:c1, :] = y[gsz:gsz + c1]

    # ---- pad_ref: halo-padded copy of [r3; r5; filler | x] -------------------
    # rows [0, gsz)       : r3, r5 (+ finite zero filler), zero halo (conv pad)
    # rows [gsz, gsz+cin) : x, -inf halo (3x3 max-pool pad)
    # Only the halo strips are initialised; centers are fully overwritten.
    zh = jnp.zeros((gsz, margin), jnp.float32)
    pad_ref[0:gsz, 0:margin] = zh
    pad_ref[0:gsz, margin + L:hwp] = zh
    nh = jnp.full((cin, margin), -jnp.inf, jnp.float32)
    pad_ref[gsz:nrow, 0:margin] = nh
    pad_ref[gsz:nrow, margin + L:hwp] = nh

    pad_ref[0:gsz, c0:c0 + L] = y[0:gsz]           # unmasked 8-row-group store
    pad_ref[gsz:nrow, c0:c0 + L] = x

    # ---- hoisted wrap masks ---------------------------------------------------
    # lane -> scaled x coordinate: xw = x_coord * nb + image_index, so
    # (x_coord + ox) in [0, W)  <=>  (xw + ox*nb) in [0, W*nb).
    lane = lax.broadcasted_iota(jnp.int32, (1, L), 1)
    xw = lane % (W * nb)
    ok = {ox: (xw + ox * nb >= 0) & (xw + ox * nb < W * nb)
          for ox in (-2, -1, 1, 2)}
    # per-row fill for the merged reads: 0 for conv rows, -inf for maxpool rows
    fill = jnp.concatenate(
        [jnp.zeros((gsz, 1), jnp.float32),
         jnp.full((cin, 1), -jnp.inf, jnp.float32)], axis=0)   # (nrow, 1)

    # ---- shared shifted-window reads -> stacked patch buffer -----------------
    # patch rows: 25 groups of gsz rows (one per 5x5 tap; the 9 inner taps carry
    # the 3x3 patches in the same rows), then cin rows holding max-pooled x.
    m = x                                            # maxpool center tap (finite)
    for dy in range(-2, 3):
        for dx in range(-2, 3):
            t = (dy + 2) * 5 + (dx + 2)
            s = (dy * W + dx) * nb
            if abs(dy) <= 1 and abs(dx) <= 1:
                win = pad_ref[:, c0 + s:c0 + s + L]            # (nrow, L)
                if dx != 0:
                    win = jnp.where(ok[dx], win, fill)
                patch_ref[t * gsz:(t + 1) * gsz, :] = win[0:gsz]
                if not (dy == 0 and dx == 0):
                    m = jnp.maximum(m, win[gsz:nrow])
            else:
                win = pad_ref[0:gsz, c0 + s:c0 + s + L]        # (gsz, L)
                if dx != 0:
                    win = jnp.where(ok[dx], win, 0.0)
                patch_ref[t * gsz:(t + 1) * gsz, :] = win
    patch_ref[25 * gsz:25 * gsz + cin, :] = m

    # ---- stage 2: 3x3 conv + 5x5 conv + maxpool-1x1 in ONE matmul ------------
    y2 = jnp.dot(wbig_ref[...], patch_ref[...],
                 preferred_element_type=jnp.float32)
    y2 = jnp.maximum(y2 + bbig_ref[...], 0.0)                  # (c3+c5+cpool, L)
    o_ref[c1:c1 + y2.shape[0], :] = y2             # one contiguous aligned store


# ------------------------------ wrapper --------------------------------------


def _inception_pallas(x_nchw, params):
    N, cin, H, W = x_nchw.shape
    HW = H * W
    f32 = jnp.float32

    c1 = params["w1"].shape[1]
    cr3 = params["w3r"].shape[1]
    cr5 = params["w5r"].shape[1]
    c3 = params["w3"].shape[-1]
    c5 = params["w5"].shape[-1]
    cpool = params["wmp"].shape[1]
    ctot = c1 + c3 + c5 + cpool
    ctot2 = c3 + c5 + cpool

    # Batch tiling: fold the batch into lanes; keep two parallel grid steps
    # when N allows so both v7x TensorCores get work.
    G = 2 if (N >= 4 and N % 2 == 0 and ((N // 2) * HW) % 128 == 0) else 1
    nb = N // G
    L = nb * HW

    gsz = _round_up(max(cr3 + cr5, 1), 8)          # 8-aligned per-tap row group
    margin = _round_up((2 * W + 2) * nb, 128)      # halo for the 5x5 window
    hwp = L + 2 * margin
    kdim = 25 * gsz + cin                          # stacked-patch contraction dim

    # ---- input: NCHW -> (cin, G*L), images interleaved (pos-major, img-minor)
    x = x_nchw.astype(f32).reshape(G, nb, cin, HW)
    x = jnp.transpose(x, (2, 0, 3, 1)).reshape(cin, G * L)

    # ---- stage-1 weight: [w3red ; w5red ; zero filler ; w1] ------------------
    zf = jnp.zeros((gsz - cr3 - cr5, cin), f32)
    wsh = jnp.concatenate([params["w3r"].T, params["w5r"].T, zf,
                           params["w1"].T], axis=0)            # (gsz+c1, cin)
    bsh = jnp.concatenate([params["b3r"].T, params["b5r"].T,
                           jnp.zeros((gsz - cr3 - cr5, 1), f32),
                           params["b1"].T], axis=0)            # (gsz+c1, 1)

    # ---- stage-2 block-diagonal weight over the stacked patch rows -----------
    blocks = []
    for dy in range(-2, 3):
        for dx in range(-2, 3):
            blk = jnp.zeros((ctot2, gsz), f32)
            if abs(dy) <= 1 and abs(dx) <= 1:
                blk = blk.at[0:c3, 0:cr3].set(params["w3"][dy + 1, dx + 1].T)
            blk = blk.at[c3:c3 + c5, cr3:cr3 + cr5].set(
                params["w5"][dy + 2, dx + 2].T)
            blocks.append(blk)
    blocks.append(jnp.zeros((ctot2, cin), f32)
                  .at[c3 + c5:ctot2, :].set(params["wmp"].T))
    wbig = jnp.concatenate(blocks, axis=1)                     # (ctot2, kdim)
    bbig = jnp.concatenate([params["b3"].T, params["b5"].T,
                            params["bmp"].T], axis=0)          # (ctot2, 1)

    kernel = functools.partial(
        _inception_kernel, H=H, W=W, nb=nb, cin=cin, c1=c1, gsz=gsz,
        margin=margin)

    # Explicit VMEM budget: double-buffered in/out blocks + resident weights
    # + the two scratch buffers, with 2x headroom.
    needed = 4 * (2 * (cin * L + ctot * L)
                  + 2 * (wsh.size + bsh.size + wbig.size + bbig.size)
                  + (gsz + cin) * hwp + kdim * L)
    vmem_limit = int(min(64 << 20, max(2 * needed, 16 << 20)))

    out = pl.pallas_call(
        kernel,
        out_shape=jax.ShapeDtypeStruct((ctot, G * L), f32),
        grid=(G,),
        in_specs=[
            pl.BlockSpec((cin, L), lambda g: (0, g)),
            pl.BlockSpec((gsz + c1, cin), lambda g: (0, 0)),
            pl.BlockSpec((gsz + c1, 1), lambda g: (0, 0)),
            pl.BlockSpec((ctot2, kdim), lambda g: (0, 0)),
            pl.BlockSpec((ctot2, 1), lambda g: (0, 0)),
        ],
        out_specs=pl.BlockSpec((ctot, L), lambda g: (0, g)),
        scratch_shapes=[
            pltpu.VMEM((gsz + cin, hwp), f32),      # halo-padded [r3;r5;fill|x]
            pltpu.VMEM((kdim, L), f32),             # stacked im2col / maxpool
        ],
        compiler_params=pltpu.CompilerParams(
            dimension_semantics=("parallel",),
            vmem_limit_bytes=vmem_limit),
    )(x, wsh, bsh, wbig, bbig)

    # (ctot, G*L) -> NCHW
    out = out.reshape(ctot, G, HW, nb)
    out = jnp.transpose(out, (1, 3, 0, 2)).reshape(N, ctot, H, W)
    return out


inception_forward = jax.jit(_inception_pallas)


# ------------------------------ params & reference ---------------------------


def init_params(key, c_in, c_red, c_out):
    ks = jax.random.split(key, 12)
    f32 = jnp.float32
    return {
        "w1": jax.random.normal(ks[0], (c_in, c_out["1x1"]), f32) * 0.1,
        "b1": jax.random.normal(ks[1], (1, c_out["1x1"]), f32) * 0.1,
        "w3r": jax.random.normal(ks[2], (c_in, c_red["3x3"]), f32) * 0.1,
        "b3r": jax.random.normal(ks[3], (1, c_red["3x3"]), f32) * 0.1,
        "w3": jax.random.normal(ks[4], (3, 3, c_red["3x3"], c_out["3x3"]), f32) * 0.1,
        "b3": jax.random.normal(ks[5], (1, c_out["3x3"]), f32) * 0.1,
        "w5r": jax.random.normal(ks[6], (c_in, c_red["5x5"]), f32) * 0.1,
        "b5r": jax.random.normal(ks[7], (1, c_red["5x5"]), f32) * 0.1,
        "w5": jax.random.normal(ks[8], (5, 5, c_red["5x5"], c_out["5x5"]), f32) * 0.1,
        "b5": jax.random.normal(ks[9], (1, c_out["5x5"]), f32) * 0.1,
        "wmp": jax.random.normal(ks[10], (c_in, c_out["maxpool"]), f32) * 0.1,
        "bmp": jax.random.normal(ks[11], (1, c_out["maxpool"]), f32) * 0.1,
    }


def _ref_forward(x_nchw, p):
    x = jnp.transpose(x_nchw, (0, 2, 3, 1)).astype(jnp.float32)
    dn = ("NHWC", "HWIO", "NHWC")
    relu = lambda v: jnp.maximum(v, 0.0)

    def conv(inp, w, b, pad):
        return lax.conv_general_dilated(
            inp, w, (1, 1), pad, dimension_numbers=dn,
            precision=lax.Precision.HIGHEST) + b

    w1 = p["w1"][None, None]
    w3r = p["w3r"][None, None]
    w5r = p["w5r"][None, None]
    wmp = p["wmp"][None, None]

    b1 = relu(conv(x, w1, p["b1"], ((0, 0), (0, 0))))
    r3 = relu(conv(x, w3r, p["b3r"], ((0, 0), (0, 0))))
    b2 = relu(conv(r3, p["w3"], p["b3"], ((1, 1), (1, 1))))
    r5 = relu(conv(x, w5r, p["b5r"], ((0, 0), (0, 0))))
    b3 = relu(conv(r5, p["w5"], p["b5"], ((2, 2), (2, 2))))
    pooled = lax.reduce_window(x, -jnp.inf, lax.max, (1, 3, 3, 1), (1, 1, 1, 1),
                               ((0, 0), (1, 1), (1, 1), (0, 0)))
    b4 = relu(conv(pooled, wmp, p["bmp"], ((0, 0), (0, 0))))
    out = jnp.concatenate([b1, b2, b3, b4], axis=-1)
    return jnp.transpose(out, (0, 3, 1, 2))


# ---------------------------------- main --------------------------------------

if __name__ == "__main__":
    c_in = 4
    c_red = {"3x3": 4, "5x5": 2}
    c_out = {"1x1": 8, "3x3": 8, "5x5": 4, "maxpool": 4}
    N, H, W = 2, 16, 16

    key = jax.random.PRNGKey(0)
    kx, kp = jax.random.split(key)
    x = jax.random.normal(kx, (N, c_in, H, W), jnp.float32)   # NCHW like PyTorch
    params = init_params(kp, c_in, c_red, c_out)

    out = inception_forward(x, params)
    out = jax.block_until_ready(out)

    expected_c = c_out["1x1"] + c_out["3x3"] + c_out["5x5"] + c_out["maxpool"]
    assert out.shape == (N, expected_c, H, W), out.shape

    ref = _ref_forward(x, params)
    assert jnp.allclose(out, ref, rtol=1e-3, atol=1e-3), \
        float(jnp.max(jnp.abs(out - ref)))

    print("KERNEL_OK")
</pallas_src>

<mosaic_0001>
module attributes {stable_mosaic.version = 11 : i64} {
  func.func @_inception_kernel(%arg0: i32, %arg1: memref<4x512xf32, #tpu.memory_space<vmem>>, %arg2: memref<16x4xf32, #tpu.memory_space<vmem>>, %arg3: memref<16x1xf32, #tpu.memory_space<vmem>>, %arg4: memref<16x204xf32, #tpu.memory_space<vmem>>, %arg5: memref<16x1xf32, #tpu.memory_space<vmem>>, %arg6: memref<24x512xf32, #tpu.memory_space<vmem>>, %arg7: memref<12x768xf32, #tpu.memory_space<vmem>>, %arg8: memref<204x512xf32, #tpu.memory_space<vmem>>) attributes {dimension_semantics = [#tpu.dimension_semantics<parallel>], iteration_bounds = array<i64: 1>, scalar_prefetch = 0 : i64, scratch_operands = 2 : i64, tpu.core_type = #tpu.core_type<tc>, window_params = [{transform_indices = @transform_0, window_bounds = array<i64: 4, 512>}, {pipeline_mode = #tpu.pipeline_mode<synchronous>, transform_indices = @transform_1, window_bounds = array<i64: 16, 4>}, {pipeline_mode = #tpu.pipeline_mode<synchronous>, transform_indices = @transform_2, window_bounds = array<i64: 16, 1>}, {pipeline_mode = #tpu.pipeline_mode<synchronous>, transform_indices = @transform_3, window_bounds = array<i64: 16, 204>}, {pipeline_mode = #tpu.pipeline_mode<synchronous>, transform_indices = @transform_4, window_bounds = array<i64: 16, 1>}, {transform_indices = @transform_5, window_bounds = array<i64: 24, 512>}]} {
    %c0 = arith.constant 0 : index
    %c0_0 = arith.constant 0 : index
    %0 = vector.load %arg1[%c0, %c0_0] : memref<4x512xf32, #tpu.memory_space<vmem>>, vector<4x512xf32>
    %c0_1 = arith.constant 0 : index
    %c0_2 = arith.constant 0 : index
    %1 = vector.load %arg2[%c0_1, %c0_2] : memref<16x4xf32, #tpu.memory_space<vmem>>, vector<16x4xf32>
    %cst = arith.constant dense<0.000000e+00> : vector<16x512xf32>
    %2 = tpu.matmul %1, %0, %cst {dimension_numbers = #tpu.dot_dimension_numbers<[1], [0], [0], [1], [0, 0, 1, 1], [], []>} : vector<16x4xf32>, vector<4x512xf32>, vector<16x512xf32> -> vector<16x512xf32>
    %c0_3 = arith.constant 0 : index
    %c0_4 = arith.constant 0 : index
    %3 = vector.load %arg3[%c0_3, %c0_4] : memref<16x1xf32, #tpu.memory_space<vmem>>, vector<16x1xf32>
    %4 = vector.broadcast %3 : vector<16x1xf32> to vector<16x512xf32>
    %5 = arith.addf %2, %4 : vector<16x512xf32>
    %cst_5 = arith.constant 0.000000e+00 : f32
    %6 = vector.broadcast %cst_5 : f32 to vector<16x512xf32>
    %7 = arith.maximumf %5, %6 : vector<16x512xf32>
    %8 = vector.extract_strided_slice %7 {offsets = [8, 0], sizes = [8, 512], strides = [1, 1]} : vector<16x512xf32> to vector<8x512xf32>
    %c0_6 = arith.constant 0 : index
    %c0_7 = arith.constant 0 : index
    %9 = vector.load %arg6[%c0_6, %c0_7] : memref<24x512xf32, #tpu.memory_space<vmem>>, vector<8x512xf32>
    tpu.vector_store %arg6[%c0_6, %c0_7], %8 {strides = array<i32>} : memref<24x512xf32, #tpu.memory_space<vmem>>, vector<8x512xf32>,
    %cst_8 = arith.constant 0.000000e+00 : f32
    %10 = vector.broadcast %cst_8 : f32 to vector<8x128xf32>
    %c0_9 = arith.constant 0 : index
    %c0_10 = arith.constant 0 : index
    %11 = vector.load %arg7[%c0_9, %c0_10] : memref<12x768xf32, #tpu.memory_space<vmem>>, vector<8x128xf32>
    tpu.vector_store %arg7[%c0_9, %c0_10], %10 {strides = array<i32>} : memref<12x768xf32, #tpu.memory_space<vmem>>, vector<8x128xf32>,
    %c0_11 = arith.constant 0 : index
    %c640 = arith.constant 640 : index
    %12 = vector.load %arg7[%c0_11, %c640] : memref<12x768xf32, #tpu.memory_space<vmem>>, vector<8x128xf32>
    tpu.vector_store %arg7[%c0_11, %c640], %10 {strides = array<i32>} : memref<12x768xf32, #tpu.memory_space<vmem>>, vector<8x128xf32>,
    %cst_12 = arith.constant 0xFF800000 : f32
    %13 = vector.broadcast %cst_12 : f32 to vector<4x128xf32>
    %c8 = arith.constant 8 : index
    %c0_13 = arith.constant 0 : index
    %14 = vector.load %arg7[%c8, %c0_13] : memref<12x768xf32, #tpu.memory_space<vmem>>, vector<4x128xf32>
    tpu.vector_store %arg7[%c8, %c0_13], %13 {strides = array<i32>} : memref<12x768xf32, #tpu.memory_space<vmem>>, vector<4x128xf32>,
    %c8_14 = arith.constant 8 : index
    %c640_15 = arith.constant 640 : index
    %15 = vector.load %arg7[%c8_14, %c640_15] : memref<12x768xf32, #tpu.memory_space<vmem>>, vector<4x128xf32>
    tpu.vector_store %arg7[%c8_14, %c640_15], %13 {strides = array<i32>} : memref<12x768xf32, #tpu.memory_space<vmem>>, vector<4x128xf32>,
    %16 = vector.extract_strided_slice %7 {offsets = [0, 0], sizes = [8, 512], strides = [1, 1]} : vector<16x512xf32> to vector<8x512xf32>
    %c0_16 = arith.constant 0 : index
    %c128 = arith.constant 128 : index
    %17 = vector.load %arg7[%c0_16, %c128] : memref<12x768xf32, #tpu.memory_space<vmem>>, vector<8x512xf32>
    tpu.vector_store %arg7[%c0_16, %c128], %16 {strides = array<i32>} : memref<12x768xf32, #tpu.memory_space<vmem>>, vector<8x512xf32>,
    %c8_17 = arith.constant 8 : index
    %c128_18 = arith.constant 128 : index
    %18 = vector.load %arg7[%c8_17, %c128_18] : memref<12x768xf32, #tpu.memory_space<vmem>>, vector<4x512xf32>
    tpu.vector_store %arg7[%c8_17, %c128_18], %0 {strides = array<i32>} : memref<12x768xf32, #tpu.memory_space<vmem>>, vector<4x512xf32>,
    %19 = tpu.iota {dimensions = array<i32: 1>} : vector<1x512xi32>
    %c32_i32 = arith.constant 32 : i32
    %c0_i32 = arith.constant 0 : i32
    %20 = arith.cmpi eq, %c32_i32, %c0_i32 : i32
    %c1_i32 = arith.constant 1 : i32
    %21 = arith.select %20, %c1_i32, %c32_i32 : i32
    %22 = vector.broadcast %21 : i32 to vector<1x512xi32>
    %23 = arith.remsi %19, %22 : vector<1x512xi32>
    %c0_i32_19 = arith.constant 0 : i32
    %24 = vector.broadcast %c0_i32_19 : i32 to vector<1x512xi32>
    %25 = arith.cmpi ne, %23, %24 : vector<1x512xi32>
    %c0_i32_20 = arith.constant 0 : i32
    %26 = vector.broadcast %c0_i32_20 : i32 to vector<1x512xi32>
    %27 = arith.cmpi slt, %23, %26 : vector<1x512xi32>
    %c0_i32_21 = arith.constant 0 : i32
    %28 = arith.cmpi slt, %21, %c0_i32_21 : i32
    %29 = vector.broadcast %28 : i1 to vector<1x512xi1>
    %30 = vector.broadcast %29 : vector<1x512xi1> to vector<1x512xi1>
    %31 = arith.xori %27, %30 : vector<1x512xi1>
    %32 = arith.andi %31, %25 : vector<1x512xi1>
    %33 = vector.broadcast %21 : i32 to vector<1x512xi32>
    %34 = arith.addi %23, %33 : vector<1x512xi32>
    %35 = arith.select %32, %34, %23 : vector<1x512xi1>, vector<1x512xi32>
    %c-4_i32 = arith.constant -4 : i32
    %36 = vector.broadcast %c-4_i32 : i32 to vector<1x512xi32>
    %37 = arith.addi %35, %36 : vector<1x512xi32>
    %c0_i32_22 = arith.constant 0 : i32
    %38 = vector.broadcast %c0_i32_22 : i32 to vector<1x512xi32>
    %39 = arith.cmpi sge, %37, %38 : vector<1x512xi32>
    %c-4_i32_23 = arith.constant -4 : i32
    %40 = vector.broadcast %c-4_i32_23 : i32 to vector<1x512xi32>
    %41 = arith.addi %35, %40 : vector<1x512xi32>
    %c32_i32_24 = arith.constant 32 : i32
    %42 = vector.broadcast %c32_i32_24 : i32 to vector<1x512xi32>
    %43 = arith.cmpi slt, %41, %42 : vector<1x512xi32>
    %44 = arith.andi %39, %43 : vector<1x512xi1>
    %c-2_i32 = arith.constant -2 : i32
    %45 = vector.broadcast %c-2_i32 : i32 to vector<1x512xi32>
    %46 = arith.addi %35, %45 : vector<1x512xi32>
    %c0_i32_25 = arith.constant 0 : i32
    %47 = vector.broadcast %c0_i32_25 : i32 to vector<1x512xi32>
    %48 = arith.cmpi sge, %46, %47 : vector<1x512xi32>
    %c-2_i32_26 = arith.constant -2 : i32
    %49 = vector.broadcast %c-2_i32_26 : i32 to vector<1x512xi32>
    %50 = arith.addi %35, %49 : vector<1x512xi32>
    %c32_i32_27 = arith.constant 32 : i32
    %51 = vector.broadcast %c32_i32_27 : i32 to vector<1x512xi32>
    %52 = arith.cmpi slt, %50, %51 : vector<1x512xi32>
    %53 = arith.andi %48, %52 : vector<1x512xi1>
    %c2_i32 = arith.constant 2 : i32
    %54 = vector.broadcast %c2_i32 : i32 to vector<1x512xi32>
    %55 = arith.addi %35, %54 : vector<1x512xi32>
    %c0_i32_28 = arith.constant 0 : i32
    %56 = vector.broadcast %c0_i32_28 : i32 to vector<1x512xi32>
    %57 = arith.cmpi sge, %55, %56 : vector<1x512xi32>
    %c2_i32_29 = arith.constant 2 : i32
    %58 = vector.broadcast %c2_i32_29 : i32 to vector<1x512xi32>
    %59 = arith.addi %35, %58 : vector<1x512xi32>
    %c32_i32_30 = arith.constant 32 : i32
    %60 = vector.broadcast %c32_i32_30 : i32 to vector<1x512xi32>
    %61 = arith.cmpi slt, %59, %60 : vector<1x512xi32>
    %62 = arith.andi %57, %61 : vector<1x512xi1>
    %c4_i32 = arith.constant 4 : i32
    %63 = vector.broadcast %c4_i32 : i32 to vector<1x512xi32>
    %64 = arith.addi %35, %63 : vector<1x512xi32>
    %c0_i32_31 = arith.constant 0 : i32
    %65 = vector.broadcast %c0_i32_31 : i32 to vector<1x512xi32>
    %66 = arith.cmpi sge, %64, %65 : vector<1x512xi32>
    %c4_i32_32 = arith.constant 4 : i32
    %67 = vector.broadcast %c4_i32_32 : i32 to vector<1x512xi32>
    %68 = arith.addi %35, %67 : vector<1x512xi32>
    %c32_i32_33 = arith.constant 32 : i32
    %69 = vector.broadcast %c32_i32_33 : i32 to vector<1x512xi32>
    %70 = arith.cmpi slt, %68, %69 : vector<1x512xi32>
    %71 = arith.andi %66, %70 : vector<1x512xi1>
    %cst_34 = arith.constant 0.000000e+00 : f32
    %72 = vector.broadcast %cst_34 : f32 to vector<8x1xf32>
    %cst_35 = arith.constant 0xFF800000 : f32
    %73 = vector.broadcast %cst_35 : f32 to vector<4x1xf32>
    %74 = tpu.concatenate %72, %73 in 0 : vector<8x1xf32>, vector<4x1xf32> -> vector<12x1xf32>
    %c0_36 = arith.constant 0 : index
    %c60 = arith.constant 60 : index
    %75 = vector.load %arg7[%c0_36, %c60] : memref<12x768xf32, #tpu.memory_space<vmem>>, vector<8x512xf32>
    %cst_37 = arith.constant 0.000000e+00 : f32
    %76 = vector.shape_cast %44 : vector<1x512xi1> to vector<1x512xi1>
    %77 = vector.broadcast %76 : vector<1x512xi1> to vector<8x512xi1>
    %78 = vector.broadcast %cst_37 : f32 to vector<8x512xf32>
    %79 = arith.select %77, %75, %78 : vector<8x512xi1>, vector<8x512xf32>
    %c0_38 = arith.constant 0 : index
    %c0_39 = arith.constant 0 : index
    %80 = vector.load %arg8[%c0_38, %c0_39] : memref<204x512xf32, #tpu.memory_space<vmem>>, vector<8x512xf32>
    tpu.vector_store %arg8[%c0_38, %c0_39], %79 {strides = array<i32>} : memref<204x512xf32, #tpu.memory_space<vmem>>, vector<8x512xf32>,
    %c0_40 = arith.constant 0 : index
    %c62 = arith.constant 62 : index
    %81 = vector.load %arg7[%c0_40, %c62] : memref<12x768xf32, #tpu.memory_space<vmem>>, vector<8x512xf32>
    %cst_41 = arith.constant 0.000000e+00 : f32
    %82 = vector.shape_cast %53 : vector<1x512xi1> to vector<1x512xi1>
    %83 = vector.broadcast %82 : vector<1x512xi1> to vector<8x512xi1>
    %84 = vector.broadcast %cst_41 : f32 to vector<8x512xf32>
    %85 = arith.select %83, %81, %84 : vector<8x512xi1>, vector<8x512xf32>
    %c8_42 = arith.constant 8 : index
    %c0_43 = arith.constant 0 : index
    %86 = vector.load %arg8[%c8_42, %c0_43] : memref<204x512xf32, #tpu.memory_space<vmem>>, vector<8x512xf32>
    tpu.vector_store %arg8[%c8_42, %c0_43], %85 {strides = array<i32>} : memref<204x512xf32, #tpu.memory_space<vmem>>, vector<8x512xf32>,
    %c0_44 = arith.constant 0 : index
    %c64 = arith.constant 64 : index
    %87 = vector.load %arg7[%c0_44, %c64] : memref<12x768xf32, #tpu.memory_space<vmem>>, vector<8x512xf32>
    %c16 = arith.constant 16 : index
    %c0_45 = arith.constant 0 : index
    %88 = vector.load %arg8[%c16, %c0_45] : memref<204x512xf32, #tpu.memory_space<vmem>>, vector<8x512xf32>
    tpu.vector_store %arg8[%c16, %c0_45], %87 {strides = array<i32>} : memref<204x512xf32, #tpu.memory_space<vmem>>, vector<8x512xf32>,
    %c0_46 = arith.constant 0 : index
    %c66 = arith.constant 66 : index
    %89 = vector.load %arg7[%c0_46, %c66] : memref<12x768xf32, #tpu.memory_space<vmem>>, vector<8x512xf32>
    %cst_47 = arith.constant 0.000000e+00 : f32
    %90 = vector.shape_cast %62 : vector<1x512xi1> to vector<1x512xi1>
    %91 = vector.broadcast %90 : vector<1x512xi1> to vector<8x512xi1>
    %92 = vector.broadcast %cst_47 : f32 to vector<8x512xf32>
    %93 = arith.select %91, %89, %92 : vector<8x512xi1>, vector<8x512xf32>
    %c24 = arith.constant 24 : index
    %c0_48 = arith.constant 0 : index
    %94 = vector.load %arg8[%c24, %c0_48] : memref<204x512xf32, #tpu.memory_space<vmem>>, vector<8x512xf32>
    tpu.vector_store %arg8[%c24, %c0_48], %93 {strides = array<i32>} : memref<204x512xf32, #tpu.memory_space<vmem>>, vector<8x512xf32>,
    %c0_49 = arith.constant 0 : index
    %c68 = arith.constant 68 : index
    %95 = vector.load %arg7[%c0_49, %c68] : memref<12x768xf32, #tpu.memory_space<vmem>>, vector<8x512xf32>
    %cst_50 = arith.constant 0.000000e+00 : f32
    %96 = vector.shape_cast %71 : vector<1x512xi1> to vector<1x512xi1>
    %97 = vector.broadcast %96 : vector<1x512xi1> to vector<8x512xi1>
    %98 = vector.broadcast %cst_50 : f32 to vector<8x512xf32>
    %99 = arith.select %97, %95, %98 : vector<8x512xi1>, vector<8x512xf32>
    %c32 = arith.constant 32 : index
    %c0_51 = arith.constant 0 : index
    %100 = vector.load %arg8[%c32, %c0_51] : memref<204x512xf32, #tpu.memory_space<vmem>>, vector<8x512xf32>
    tpu.vector_store %arg8[%c32, %c0_51], %99 {strides = array<i32>} : memref<204x512xf32, #tpu.memory_space<vmem>>, vector<8x512xf32>,
    %c0_52 = arith.constant 0 : index
    %c92 = arith.constant 92 : index
    %101 = vector.load %arg7[%c0_52, %c92] : memref<12x768xf32, #tpu.memory_space<vmem>>, vector<8x512xf32>
    %cst_53 = arith.constant 0.000000e+00 : f32
    %102 = vector.shape_cast %44 : vector<1x512xi1> to vector<1x512xi1>
    %103 = vector.broadcast %102 : vector<1x512xi1> to vector<8x512xi1>
    %104 = vector.broadcast %cst_53 : f32 to vector<8x512xf32>
    %105 = arith.select %103, %101, %104 : vector<8x512xi1>, vector<8x512xf32>
    %c40 = arith.constant 40 : index
    %c0_54 = arith.constant 0 : index
    %106 = vector.load %arg8[%c40, %c0_54] : memref<204x512xf32, #tpu.memory_space<vmem>>, vector<8x512xf32>
    tpu.vector_store %arg8[%c40, %c0_54], %105 {strides = array<i32>} : memref<204x512xf32, #tpu.memory_space<vmem>>, vector<8x512xf32>,
    %c0_55 = arith.constant 0 : index
    %c94 = arith.constant 94 : index
    %107 = vector.load %arg7[%c0_55, %c94] : memref<12x768xf32, #tpu.memory_space<vmem>>, vector<12x512xf32>
    %108 = vector.shape_cast %53 : vector<1x512xi1> to vector<1x512xi1>
    %109 = vector.broadcast %108 : vector<1x512xi1> to vector<12x512xi1>
    %110 = vector.shape_cast %74 : vector<12x1xf32> to vector<12x1xf32>
    %111 = vector.broadcast %110 : vector<12x1xf32> to vector<12x512xf32>
    %112 = arith.select %109, %107, %111 : vector<12x512xi1>, vector<12x512xf32>
    %113 = vector.extract_strided_slice %112 {offsets = [0, 0], sizes = [8, 512], strides = [1, 1]} : vector<12x512xf32> to vector<8x512xf32>
    %c48 = arith.constant 48 : index
    %c0_56 = arith.constant 0 : index
    %114 = vector.load %arg8[%c48, %c0_56] : memref<204x512xf32, #tpu.memory_space<vmem>>, vector<8x512xf32>
    tpu.vector_store %arg8[%c48, %c0_56], %113 {strides = array<i32>} : memref<204x512xf32, #tpu.memory_space<vmem>>, vector<8x512xf32>,
    %115 = vector.extract_strided_slice %112 {offsets = [8, 0], sizes = [4, 512], strides = [1, 1]} : vector<12x512xf32> to vector<4x512xf32>
    %116 = arith.maximumf %0, %115 : vector<4x512xf32>
    %c0_57 = arith.constant 0 : index
    %c96 = arith.constant 96 : index
    %117 = vector.load %arg7[%c0_57, %c96] : memref<12x768xf32, #tpu.memory_space<vmem>>, vector<12x512xf32>
    %118 = vector.extract_strided_slice %117 {offsets = [0, 0], sizes = [8, 512], strides = [1, 1]} : vector<12x512xf32> to vector<8x512xf32>
    %c56 = arith.constant 56 : index
    %c0_58 = arith.constant 0 : index
    %119 = vector.load %arg8[%c56, %c0_58] : memref<204x512xf32, #tpu.memory_space<vmem>>, vector<8x512xf32>
    tpu.vector_store %arg8[%c56, %c0_58], %118 {strides = array<i32>} : memref<204x512xf32, #tpu.memory_space<vmem>>, vector<8x512xf32>,
    %120 = vector.extract_strided_slice %117 {offsets = [8, 0], sizes = [4, 512], strides = [1, 1]} : vector<12x512xf32> to vector<4x512xf32>
    %121 = arith.maximumf %116, %120 : vector<4x512xf32>
    %c0_59 = arith.constant 0 : index
    %c98 = arith.constant 98 : index
    %122 = vector.load %arg7[%c0_59, %c98] : memref<12x768xf32, #tpu.memory_space<vmem>>, vector<12x512xf32>
    %123 = vector.shape_cast %62 : vector<1x512xi1> to vector<1x512xi1>
    %124 = vector.broadcast %123 : vector<1x512xi1> to vector<12x512xi1>
    %125 = vector.shape_cast %74 : vector<12x1xf32> to vector<12x1xf32>
    %126 = vector.broadcast %125 : vector<12x1xf32> to vector<12x512xf32>
    %127 = arith.select %124, %122, %126 : vector<12x512xi1>, vector<12x512xf32>
    %128 = vector.extract_strided_slice %127 {offsets = [0, 0], sizes = [8, 512], strides = [1, 1]} : vector<12x512xf32> to vector<8x512xf32>
    %c64_60 = arith.constant 64 : index
    %c0_61 = arith.constant 0 : index
    %129 = vector.load %arg8[%c64_60, %c0_61] : memref<204x512xf32, #tpu.memory_space<vmem>>, vector<8x512xf32>
    tpu.vector_store %arg8[%c64_60, %c0_61], %128 {strides = array<i32>} : memref<204x512xf32, #tpu.memory_space<vmem>>, vector<8x512xf32>,
    %130 = vector.extract_strided_slice %127 {offsets = [8, 0], sizes = [4, 512], strides = [1, 1]} : vector<12x512xf32> to vector<4x512xf32>
    %131 = arith.maximumf %121, %130 : vector<4x512xf32>
    %c0_62 = arith.constant 0 : index
    %c100 = arith.constant 100 : index
    %132 = vector.load %arg7[%c0_62, %c100] : memref<12x768xf32, #tpu.memory_space<vmem>>, vector<8x512xf32>
    %cst_63 = arith.constant 0.000000e+00 : f32
    %133 = vector.shape_cast %71 : vector<1x512xi1> to vector<1x512xi1>
    %134 = vector.broadcast %133 : vector<1x512xi1> to vector<8x512xi1>
    %135 = vector.broadcast %cst_63 : f32 to vector<8x512xf32>
    %136 = arith.select %134, %132, %135 : vector<8x512xi1>, vector<8x512xf32>
    %c72 = arith.constant 72 : index
    %c0_64 = arith.constant 0 : index
    %137 = vector.load %arg8[%c72, %c0_64] : memref<204x512xf32, #tpu.memory_space<vmem>>, vector<8x512xf32>
    tpu.vector_store %arg8[%c72, %c0_64], %136 {strides = array<i32>} : memref<204x512xf32, #tpu.memory_space<vmem>>, vector<8x512xf32>,
    %c0_65 = arith.constant 0 : index
    %c124 = arith.constant 124 : index
    %138 = vector.load %arg7[%c0_65, %c124] : memref<12x768xf32, #tpu.memory_space<vmem>>, vector<8x512xf32>
    %cst_66 = arith.constant 0.000000e+00 : f32
    %139 = vector.shape_cast %44 : vector<1x512xi1> to vector<1x512xi1>
    %140 = vector.broadcast %139 : vector<1x512xi1> to vector<8x512xi1>
    %141 = vector.broadcast %cst_66 : f32 to vector<8x512xf32>
    %142 = arith.select %140, %138, %141 : vector<8x512xi1>, vector<8x512xf32>
    %c80 = arith.constant 80 : index
    %c0_67 = arith.constant 0 : index
    %143 = vector.load %arg8[%c80, %c0_67] : memref<204x512xf32, #tpu.memory_space<vmem>>, vector<8x512xf32>
    tpu.vector_store %arg8[%c80, %c0_67], %142 {strides = array<i32>} : memref<204x512xf32, #tpu.memory_space<vmem>>, vector<8x512xf32>,
    %c0_68 = arith.constant 0 : index
    %c126 = arith.constant 126 : index
    %144 = vector.load %arg7[%c0_68, %c126] : memref<12x768xf32, #tpu.memory_space<vmem>>, vector<12x512xf32>
    %145 = vector.shape_cast %53 : vector<1x512xi1> to vector<1x512xi1>
    %146 = vector.broadcast %145 : vector<1x512xi1> to vector<12x512xi1>
    %147 = vector.shape_cast %74 : vector<12x1xf32> to vector<12x1xf32>
    %148 = vector.broadcast %147 : vector<12x1xf32> to vector<12x512xf32>
    %149 = arith.select %146, %144, %148 : vector<12x512xi1>, vector<12x512xf32>
    %150 = vector.extract_strided_slice %149 {offsets = [0, 0], sizes = [8, 512], strides = [1, 1]} : vector<12x512xf32> to vector<8x512xf32>
    %c88 = arith.constant 88 : index
    %c0_69 = arith.constant 0 : index
    %151 = vector.load %arg8[%c88, %c0_69] : memref<204x512xf32, #tpu.memory_space<vmem>>, vector<8x512xf32>
    tpu.vector_store %arg8[%c88, %c0_69], %150 {strides = array<i32>} : memref<204x512xf32, #tpu.memory_space<vmem>>, vector<8x512xf32>,
    %152 = vector.extract_strided_slice %149 {offsets = [8, 0], sizes = [4, 512], strides = [1, 1]} : vector<12x512xf32> to vector<4x512xf32>
    %153 = arith.maximumf %131, %152 : vector<4x512xf32>
    %c0_70 = arith.constant 0 : index
    %c128_71 = arith.constant 128 : index
    %154 = vector.load %arg7[%c0_70, %c128_71] : memref<12x768xf32, #tpu.memory_space<vmem>>, vector<12x512xf32>
    %155 = vector.extract_strided_slice %154 {offsets = [0, 0], sizes = [8, 512], strides = [1, 1]} : vector<12x512xf32> to vector<8x512xf32>
    %c96_72 = arith.constant 96 : index
    %c0_73 = arith.constant 0 : index
    %156 = vector.load %arg8[%c96_72, %c0_73] : memref<204x512xf32, #tpu.memory_space<vmem>>, vector<8x512xf32>
    tpu.vector_store %arg8[%c96_72, %c0_73], %155 {strides = array<i32>} : memref<204x512xf32, #tpu.memory_space<vmem>>, vector<8x512xf32>,
    %c0_74 = arith.constant 0 : index
    %c130 = arith.constant 130 : index
    %157 = vector.load %arg7[%c0_74, %c130] : memref<12x768xf32, #tpu.memory_space<vmem>>, vector<12x512xf32>
    %158 = vector.shape_cast %62 : vector<1x512xi1> to vector<1x512xi1>
    %159 = vector.broadcast %158 : vector<1x512xi1> to vector<12x512xi1>
    %160 = vector.shape_cast %74 : vector<12x1xf32> to vector<12x1xf32>
    %161 = vector.broadcast %160 : vector<12x1xf32> to vector<12x512xf32>
    %162 = arith.select %159, %157, %161 : vector<12x512xi1>, vector<12x512xf32>
    %163 = vector.extract_strided_slice %162 {offsets = [0, 0], sizes = [8, 512], strides = [1, 1]} : vector<12x512xf32> to vector<8x512xf32>
    %c104 = arith.constant 104 : index
    %c0_75 = arith.constant 0 : index
    %164 = vector.load %arg8[%c104, %c0_75] : memref<204x512xf32, #tpu.memory_space<vmem>>, vector<8x512xf32>
    tpu.vector_store %arg8[%c104, %c0_75], %163 {strides = array<i32>} : memref<204x512xf32, #tpu.memory_space<vmem>>, vector<8x512xf32>,
    %165 = vector.extract_strided_slice %162 {offsets = [8, 0], sizes = [4, 512], strides = [1, 1]} : vector<12x512xf32> to vector<4x512xf32>
    %166 = arith.maximumf %153, %165 : vector<4x512xf32>
    %c0_76 = arith.constant 0 : index
    %c132 = arith.constant 132 : index
    %167 = vector.load %arg7[%c0_76, %c132] : memref<12x768xf32, #tpu.memory_space<vmem>>, vector<8x512xf32>
    %cst_77 = arith.constant 0.000000e+00 : f32
    %168 = vector.shape_cast %71 : vector<1x512xi1> to vector<1x512xi1>
    %169 = vector.broadcast %168 : vector<1x512xi1> to vector<8x512xi1>
    %170 = vector.broadcast %cst_77 : f32 to vector<8x512xf32>
    %171 = arith.select %169, %167, %170 : vector<8x512xi1>, vector<8x512xf32>
    %c112 = arith.constant 112 : index
    %c0_78 = arith.constant 0 : index
    %172 = vector.load %arg8[%c112, %c0_78] : memref<204x512xf32, #tpu.memory_space<vmem>>, vector<8x512xf32>
    tpu.vector_store %arg8[%c112, %c0_78], %171 {strides = array<i32>} : memref<204x512xf32, #tpu.memory_space<vmem>>, vector<8x512xf32>,
    %c0_79 = arith.constant 0 : index
    %c156 = arith.constant 156 : index
    %173 = vector.load %arg7[%c0_79, %c156] : memref<12x768xf32, #tpu.memory_space<vmem>>, vector<8x512xf32>
    %cst_80 = arith.constant 0.000000e+00 : f32
    %174 = vector.shape_cast %44 : vector<1x512xi1> to vector<1x512xi1>
    %175 = vector.broadcast %174 : vector<1x512xi1> to vector<8x512xi1>
    %176 = vector.broadcast %cst_80 : f32 to vector<8x512xf32>
    %177 = arith.select %175, %173, %176 : vector<8x512xi1>, vector<8x512xf32>
    %c120 = arith.constant 120 : index
    %c0_81 = arith.constant 0 : index
    %178 = vector.load %arg8[%c120, %c0_81] : memref<204x512xf32, #tpu.memory_space<vmem>>, vector<8x512xf32>
    tpu.vector_store %arg8[%c120, %c0_81], %177 {strides = array<i32>} : memref<204x512xf32, #tpu.memory_space<vmem>>, vector<8x512xf32>,
    %c0_82 = arith.constant 0 : index
    %c158 = arith.constant 158 : index
    %179 = vector.load %arg7[%c0_82, %c158] : memref<12x768xf32, #tpu.memory_space<vmem>>, vector<12x512xf32>
    %180 = vector.shape_cast %53 : vector<1x512xi1> to vector<1x512xi1>
    %181 = vector.broadcast %180 : vector<1x512xi1> to vector<12x512xi1>
    %182 = vector.shape_cast %74 : vector<12x1xf32> to vector<12x1xf32>
    %183 = vector.broadcast %182 : vector<12x1xf32> to vector<12x512xf32>
    %184 = arith.select %181, %179, %183 : vector<12x512xi1>, vector<12x512xf32>
    %185 = vector.extract_strided_slice %184 {offsets = [0, 0], sizes = [8, 512], strides = [1, 1]} : vector<12x512xf32> to vector<8x512xf32>
    %c128_83 = arith.constant 128 : index
    %c0_84 = arith.constant 0 : index
    %186 = vector.load %arg8[%c128_83, %c0_84] : memref<204x512xf32, #tpu.memory_space<vmem>>, vector<8x512xf32>
    tpu.vector_store %arg8[%c128_83, %c0_84], %185 {strides = array<i32>} : memref<204x512xf32, #tpu.memory_space<vmem>>, vector<8x512xf32>,
    %187 = vector.extract_strided_slice %184 {offsets = [8, 0], sizes = [4, 512], strides = [1, 1]} : vector<12x512xf32> to vector<4x512xf32>
    %188 = arith.maximumf %166, %187 : vector<4x512xf32>
    %c0_85 = arith.constant 0 : index
    %c160 = arith.constant 160 : index
    %189 = vector.load %arg7[%c0_85, %c160] : memref<12x768xf32, #tpu.memory_space<vmem>>, vector<12x512xf32>
    %190 = vector.extract_strided_slice %189 {offsets = [0, 0], sizes = [8, 512], strides = [1, 1]} : vector<12x512xf32> to vector<8x512xf32>
    %c136 = arith.constant 136 : index
    %c0_86 = arith.constant 0 : index
    %191 = vector.load %arg8[%c136, %c0_86] : memref<204x512xf32, #tpu.memory_space<vmem>>, vector<8x512xf32>
    tpu.vector_store %arg8[%c136, %c0_86], %190 {strides = array<i32>} : memref<204x512xf32, #tpu.memory_space<vmem>>, vector<8x512xf32>,
    %192 = vector.extract_strided_slice %189 {offsets = [8, 0], sizes = [4, 512], strides = [1, 1]} : vector<12x512xf32> to vector<4x512xf32>
    %193 = arith.maximumf %188, %192 : vector<4x512xf32>
    %c0_87 = arith.constant 0 : index
    %c162 = arith.constant 162 : index
    %194 = vector.load %arg7[%c0_87, %c162] : memref<12x768xf32, #tpu.memory_space<vmem>>, vector<12x512xf32>
    %195 = vector.shape_cast %62 : vector<1x512xi1> to vector<1x512xi1>
    %196 = vector.broadcast %195 : vector<1x512xi1> to vector<12x512xi1>
    %197 = vector.shape_cast %74 : vector<12x1xf32> to vector<12x1xf32>
    %198 = vector.broadcast %197 : vector<12x1xf32> to vector<12x512xf32>
    %199 = arith.select %196, %194, %198 : vector<12x512xi1>, vector<12x512xf32>
    %200 = vector.extract_strided_slice %199 {offsets = [0, 0], sizes = [8, 512], strides = [1, 1]} : vector<12x512xf32> to vector<8x512xf32>
    %c144 = arith.constant 144 : index
    %c0_88 = arith.constant 0 : index
    %201 = vector.load %arg8[%c144, %c0_88] : memref<204x512xf32, #tpu.memory_space<vmem>>, vector<8x512xf32>
    tpu.vector_store %arg8[%c144, %c0_88], %200 {strides = array<i32>} : memref<204x512xf32, #tpu.memory_space<vmem>>, vector<8x512xf32>,
    %202 = vector.extract_strided_slice %199 {offsets = [8, 0], sizes = [4, 512], strides = [1, 1]} : vector<12x512xf32> to vector<4x512xf32>
    %203 = arith.maximumf %193, %202 : vector<4x512xf32>
    %c0_89 = arith.constant 0 : index
    %c164 = arith.constant 164 : index
    %204 = vector.load %arg7[%c0_89, %c164] : memref<12x768xf32, #tpu.memory_space<vmem>>, vector<8x512xf32>
    %cst_90 = arith.constant 0.000000e+00 : f32
    %205 = vector.shape_cast %71 : vector<1x512xi1> to vector<1x512xi1>
    %206 = vector.broadcast %205 : vector<1x512xi1> to vector<8x512xi1>
    %207 = vector.broadcast %cst_90 : f32 to vector<8x512xf32>
    %208 = arith.select %206, %204, %207 : vector<8x512xi1>, vector<8x512xf32>
    %c152 = arith.constant 152 : index
    %c0_91 = arith.constant 0 : index
    %209 = vector.load %arg8[%c152, %c0_91] : memref<204x512xf32, #tpu.memory_space<vmem>>, vector<8x512xf32>
    tpu.vector_store %arg8[%c152, %c0_91], %208 {strides = array<i32>} : memref<204x512xf32, #tpu.memory_space<vmem>>, vector<8x512xf32>,
    %c0_92 = arith.constant 0 : index
    %c188 = arith.constant 188 : index
    %210 = vector.load %arg7[%c0_92, %c188] : memref<12x768xf32, #tpu.memory_space<vmem>>, vector<8x512xf32>
    %cst_93 = arith.constant 0.000000e+00 : f32
    %211 = vector.shape_cast %44 : vector<1x512xi1> to vector<1x512xi1>
    %212 = vector.broadcast %211 : vector<1x512xi1> to vector<8x512xi1>
    %213 = vector.broadcast %cst_93 : f32 to vector<8x512xf32>
    %214 = arith.select %212, %210, %213 : vector<8x512xi1>, vector<8x512xf32>
    %c160_94 = arith.constant 160 : index
    %c0_95 = arith.constant 0 : index
    %215 = vector.load %arg8[%c160_94, %c0_95] : memref<204x512xf32, #tpu.memory_space<vmem>>, vector<8x512xf32>
    tpu.vector_store %arg8[%c160_94, %c0_95], %214 {strides = array<i32>} : memref<204x512xf32, #tpu.memory_space<vmem>>, vector<8x512xf32>,
    %c0_96 = arith.constant 0 : index
    %c190 = arith.constant 190 : index
    %216 = vector.load %arg7[%c0_96, %c190] : memref<12x768xf32, #tpu.memory_space<vmem>>, vector<8x512xf32>
    %cst_97 = arith.constant 0.000000e+00 : f32
    %217 = vector.shape_cast %53 : vector<1x512xi1> to vector<1x512xi1>
    %218 = vector.broadcast %217 : vector<1x512xi1> to vector<8x512xi1>
    %219 = vector.broadcast %cst_97 : f32 to vector<8x512xf32>
    %220 = arith.select %218, %216, %219 : vector<8x512xi1>, vector<8x512xf32>
    %c168 = arith.constant 168 : index
    %c0_98 = arith.constant 0 : index
    %221 = vector.load %arg8[%c168, %c0_98] : memref<204x512xf32, #tpu.memory_space<vmem>>, vector<8x512xf32>
    tpu.vector_store %arg8[%c168, %c0_98], %220 {strides = array<i32>} : memref<204x512xf32, #tpu.memory_space<vmem>>, vector<8x512xf32>,
    %c0_99 = arith.constant 0 : index
    %c192 = arith.constant 192 : index
    %222 = vector.load %arg7[%c0_99, %c192] : memref<12x768xf32, #tpu.memory_space<vmem>>, vector<8x512xf32>
    %c176 = arith.constant 176 : index
    %c0_100 = arith.constant 0 : index
    %223 = vector.load %arg8[%c176, %c0_100] : memref<204x512xf32, #tpu.memory_space<vmem>>, vector<8x512xf32>
    tpu.vector_store %arg8[%c176, %c0_100], %222 {strides = array<i32>} : memref<204x512xf32, #tpu.memory_space<vmem>>, vector<8x512xf32>,
    %c0_101 = arith.constant 0 : index
    %c194 = arith.constant 194 : index
    %224 = vector.load %arg7[%c0_101, %c194] : memref<12x768xf32, #tpu.memory_space<vmem>>, vector<8x512xf32>
    %cst_102 = arith.constant 0.000000e+00 : f32
    %225 = vector.shape_cast %62 : vector<1x512xi1> to vector<1x512xi1>
    %226 = vector.broadcast %225 : vector<1x512xi1> to vector<8x512xi1>
    %227 = vector.broadcast %cst_102 : f32 to vector<8x512xf32>
    %228 = arith.select %226, %224, %227 : vector<8x512xi1>, vector<8x512xf32>
    %c184 = arith.constant 184 : index
    %c0_103 = arith.constant 0 : index
    %229 = vector.load %arg8[%c184, %c0_103] : memref<204x512xf32, #tpu.memory_space<vmem>>, vector<8x512xf32>
    tpu.vector_store %arg8[%c184, %c0_103], %228 {strides = array<i32>} : memref<204x512xf32, #tpu.memory_space<vmem>>, vector<8x512xf32>,
    %c0_104 = arith.constant 0 : index
    %c196 = arith.constant 196 : index
    %230 = vector.load %arg7[%c0_104, %c196] : memref<12x768xf32, #tpu.memory_space<vmem>>, vector<8x512xf32>
    %cst_105 = arith.constant 0.000000e+00 : f32
    %231 = vector.shape_cast %71 : vector<1x512xi1> to vector<1x512xi1>
    %232 = vector.broadcast %231 : vector<1x512xi1> to vector<8x512xi1>
    %233 = vector.broadcast %cst_105 : f32 to vector<8x512xf32>
    %234 = arith.select %232, %230, %233 : vector<8x512xi1>, vector<8x512xf32>
    %c192_106 = arith.constant 192 : index
    %c0_107 = arith.constant 0 : index
    %235 = vector.load %arg8[%c192_106, %c0_107] : memref<204x512xf32, #tpu.memory_space<vmem>>, vector<8x512xf32>
    tpu.vector_store %arg8[%c192_106, %c0_107], %234 {strides = array<i32>} : memref<204x512xf32, #tpu.memory_space<vmem>>, vector<8x512xf32>,
    %c200 = arith.constant 200 : index
    %c0_108 = arith.constant 0 : index
    %236 = vector.load %arg8[%c200, %c0_108] : memref<204x512xf32, #tpu.memory_space<vmem>>, vector<4x512xf32>
    tpu.vector_store %arg8[%c200, %c0_108], %203 {strides = array<i32>} : memref<204x512xf32, #tpu.memory_space<vmem>>, vector<4x512xf32>,
    %c0_109 = arith.constant 0 : index
    %c0_110 = arith.constant 0 : index
    %237 = vector.load %arg4[%c0_109, %c0_110] : memref<16x204xf32, #tpu.memory_space<vmem>>, vector<16x204xf32>
    %c0_111 = arith.constant 0 : index
    %c0_112 = arith.constant 0 : index
    %238 = vector.load %arg8[%c0_111, %c0_112] : memref<204x512xf32, #tpu.memory_space<vmem>>, vector<204x512xf32>
    %cst_113 = arith.constant dense<0.000000e+00> : vector<16x512xf32>
    %239 = tpu.matmul %237, %238, %cst_113 {dimension_numbers = #tpu.dot_dimension_numbers<[1], [0], [0], [1], [0, 0, 1, 1], [], []>} : vector<16x204xf32>, vector<204x512xf32>, vector<16x512xf32> -> vector<16x512xf32>
    %c0_114 = arith.constant 0 : index
    %c0_115 = arith.constant 0 : index
    %240 = vector.load %arg5[%c0_114, %c0_115] : memref<16x1xf32, #tpu.memory_space<vmem>>, vector<16x1xf32>
    %241 = vector.broadcast %240 : vector<16x1xf32> to vector<16x512xf32>
    %242 = arith.addf %239, %241 : vector<16x512xf32>
    %cst_116 = arith.constant 0.000000e+00 : f32
    %243 = vector.broadcast %cst_116 : f32 to vector<16x512xf32>
    %244 = arith.maximumf %242, %243 : vector<16x512xf32>
    %c8_117 = arith.constant 8 : index
    %c0_118 = arith.constant 0 : index
    %245 = vector.load %arg6[%c8_117, %c0_118] : memref<24x512xf32, #tpu.memory_space<vmem>>, vector<16x512xf32>
    tpu.vector_store %arg6[%c8_117, %c0_118], %244 {strides = array<i32>} : memref<24x512xf32, #tpu.memory_space<vmem>>, vector<16x512xf32>,
    return
  }
  func.func @transform_0(%arg0: i32) -> (i32, i32) {
    %c0_i32 = arith.constant 0 : i32
    %c0_i32_0 = arith.constant 0 : i32
    return %c0_i32, %arg0 : i32, i32
  }
  func.func @transform_1(%arg0: i32) -> (i32, i32) {
    %c0_i32 = arith.constant 0 : i32
    %c0_i32_0 = arith.constant 0 : i32
    %c0_i32_1 = arith.constant 0 : i32
    return %c0_i32, %c0_i32_0 : i32, i32
  }
  func.func @transform_2(%arg0: i32) -> (i32, i32) {
    %c0_i32 = arith.constant 0 : i32
    %c0_i32_0 = arith.constant 0 : i32
    %c0_i32_1 = arith.constant 0 : i32
    return %c0_i32, %c0_i32_0 : i32, i32
  }
  func.func @transform_3(%arg0: i32) -> (i32, i32) {
    %c0_i32 = arith.constant 0 : i32
    %c0_i32_0 = arith.constant 0 : i32
    %c0_i32_1 = arith.constant 0 : i32
    return %c0_i32, %c0_i32_0 : i32, i32
  }
  func.func @transform_4(%arg0: i32) -> (i32, i32) {
    %c0_i32 = arith.constant 0 : i32
    %c0_i32_0 = arith.constant 0 : i32
    %c0_i32_1 = arith.constant 0 : i32
    return %c0_i32, %c0_i32_0 : i32, i32
  }
  func.func @transform_5(%arg0: i32) -> (i32, i32) {
    %c0_i32 = arith.constant 0 : i32
    %c0_i32_0 = arith.constant 0 : i32
    return %c0_i32, %arg0 : i32, i32
  }
}

</mosaic_0001>

<llo_original>
// kernel: _inception_pallas.1
$region0: #{_inception_pallas.1}
  #allocation0 [shape = 'u32[]', space=smem, size = 0x4, offset = 0x4, fixed_abs, tag = 'smem constant byte address 0x4 - core index']
  #allocation1 [shape = 'u32[144,128]{1,0:T(1,128)}', space=vmem, size = 0x12000, scoped, tag = 'internal scratch']
  #allocation2 [shape = 'f32[12,768]{1,0:T(8,128)}', space=vmem, size = 0xc000, scoped, tag = 'scratch operand']
  #allocation3 [shape = 'f32[204,512]{1,0:T(8,128)}', space=vmem, size = 0x68000, scoped, tag = 'scratch operand']
  %s0 = inlined_call_operand.vmem [shape: f32[4,512], index: 0, kind: input, shape index: {}]
  %s1 = inlined_call_operand.vmem [shape: f32[16,4], index: 1, kind: input, shape index: {}]
  %s2 = inlined_call_operand.vmem [shape: f32[16,1], index: 2, kind: input, shape index: {}]
  %s3 = inlined_call_operand.vmem [shape: f32[16,204], index: 3, kind: input, shape index: {}]
  %s4 = inlined_call_operand.vmem [shape: f32[16,1], index: 4, kind: input, shape index: {}]
  %s5 = inlined_call_operand.vmem [shape: f32[24,512], index: 5, kind: output, shape index: {}]
  %s6 = sld [smem:[#allocation0]]
  $region30: #{_inception_pallas.1} parent=0
    _
  %s8 = ssub.s32 1, %s6
  %s9 = scalar_select 0, %s8, %s6
  // Predicated region
  $region2: #{_inception_pallas.1} parent=0 // pred_check
    _
  $region3: #{_inception_pallas.1} parent=0 // pred_check_branch
    %11 = sbr.rel (0) target = $region5
  $region4: #{_inception_pallas.1} parent=0 // pred_region
    _
  $region5: #{_inception_pallas.1} parent=0 // pred_fallthru
    _
  // Predicated region
  $region6: #{_inception_pallas.1} parent=0 // pred_check
    _
  $region7: #{_inception_pallas.1} parent=0 // pred_check_branch
    %13 = sbr.rel (0) target = $region9
  $region8: #{_inception_pallas.1} parent=0 // pred_region
    _
  $region9: #{_inception_pallas.1} parent=0 // pred_fallthru
    _
  // Predicated region
  $region10: #{_inception_pallas.1} parent=0 // pred_check
    _
  $region11: #{_inception_pallas.1} parent=0 // pred_check_branch
    %15 = sbr.rel (0) target = $region13
  $region12: #{_inception_pallas.1} parent=0 // pred_region
    _
  $region13: #{_inception_pallas.1} parent=0 // pred_fallthru
    _
  // Predicated region
  $region14: #{_inception_pallas.1} parent=0 // pred_check
    _
  $region15: #{_inception_pallas.1} parent=0 // pred_check_branch
    %17 = sbr.rel (0) target = $region17
  $region16: #{_inception_pallas.1} parent=0 // pred_region
    _
  $region17: #{_inception_pallas.1} parent=0 // pred_fallthru
    _
  // Predicated region
  $region18: #{_inception_pallas.1} parent=0 // pred_check
    _
  $region19: #{_inception_pallas.1} parent=0 // pred_check_branch
    %19 = sbr.rel (0) target = $region21
  $region20: #{_inception_pallas.1} parent=0 // pred_region
    _
  $region21: #{_inception_pallas.1} parent=0 // pred_fallthru
    _
  %v20 = vld [vmem:[%s0] sm:$0xff]
  %v21 = vld [vmem:[%s0 + $0x8] sm:$0xff]
  %v22 = vld [vmem:[%s1] sm:$0xff]
  %v23 = vld [vmem:[%s1 + $0x8] sm:$0xff]
  %v24 = vld [vmem:[%s2] sm:$0xff]
  %v25 = vld [vmem:[%s2 + $0x8] sm:$0xff]
  %27 = vset.pattern.permute.xlu0 0
  %28 = vperm.xlu0 %27, %v24
  %v29 = vpop.permute.xlu0 %28
  %32 = vset.pattern.permute.xlu0 0
  %33 = vperm.xlu0 %32, %v25
  %v34 = vpop.permute.xlu0 %33
  %v38 = vcombine.high %v20, %v20
  %v39 = vcombine.high %v21, %v21
  %vm40 = vcmask 31744
  %v42 = vsel %vm40, %v22, 0
  %v45 = vsel %vm40, %v23, 0
  %vm47 = vcmask 1043456
  %v48 = vsel %vm47, %v20, 0
  %v50 = vsel %vm47, %v38, 0
  %v52 = vsel %vm47, %v21, 0
  %v54 = vsel %vm47, %v39, 0
  %56 = vmatprep.subr.mxu0 %v50
  %57 = vmatpush1.msra.mxu0 %v48
  %58 = vmatprep.subr.mxu0 0.0
  %59 = vmatpush1.msra.mxu0 0.0
  %60 = vmatprep.subr.mxu0 0.0
  %61 = vmatpush1.msra.mxu0 0.0
  %62 = vmatprep.subr.mxu0 0.0
  %63 = vmatpush1.msra.mxu0 0.0
  %64 = vmatprep.subr.mxu0 0.0
  %65 = vmatpush1.msra.mxu0 0.0
  %66 = vmatprep.subr.mxu0 0.0
  %67 = vmatpush1.msra.mxu0 0.0
  %68 = vmatprep.subr.mxu0 0.0
  %69 = vmatpush1.msra.mxu0 0.0
  %70 = vmatprep.subr.mxu0 0.0
  %71 = vmatpush1.msra.mxu0 0.0
  %72 = vmatprep.subr.mxu0 0.0
  %73 = vmatpush1.msra.mxu0 0.0
  %74 = vmatprep.subr.mxu0 0.0
  %75 = vmatpush1.msra.mxu0 0.0
  %76 = vmatprep.subr.mxu0 0.0
  %77 = vmatpush1.msra.mxu0 0.0
  %78 = vmatprep.subr.mxu0 0.0
  %79 = vmatpush1.msra.mxu0 0.0
  %80 = vmatprep.subr.mxu0 0.0
  %81 = vmatpush1.msra.mxu0 0.0
  %82 = vmatprep.subr.mxu0 0.0
  %83 = vmatpush1.msra.mxu0 0.0
  %84 = vmatprep.subr.mxu0 0.0
  %85 = vmatpush1.msra.mxu0 0.0
  %86 = vmatprep.subr.mxu0 0.0
  %87 = vmatpush1.msra.mxu0 0.0
  %88 = vmatprep.subr.mxu0 0.0
  %89 = vmatpush1.msra.mxu0 0.0
  %90 = vmatprep.subr.mxu0 0.0
  %91 = vmatpush1.msra.mxu0 0.0
  %92 = vmatprep.subr.mxu0 0.0
  %93 = vmatpush1.msra.mxu0 0.0
  %94 = vmatprep.subr.mxu0 0.0
  %95 = vmatpush1.msra.mxu0 0.0
  %96 = vmatprep.subr.mxu0 0.0
  %97 = vmatpush1.msra.mxu0 0.0
  %98 = vmatprep.subr.mxu0 0.0
  %99 = vmatpush1.msra.mxu0 0.0
  %100 = vmatprep.subr.mxu0 0.0
  %101 = vmatpush1.msra.mxu0 0.0
  %102 = vmatprep.subr.mxu0 0.0
  %103 = vmatpush1.msra.mxu0 0.0
  %104 = vmatprep.subr.mxu0 0.0
  %105 = vmatpush1.msra.mxu0 0.0
  %106 = vmatprep.subr.mxu0 0.0
  %107 = vmatpush1.msra.mxu0 0.0
  %108 = vmatprep.subr.mxu0 0.0
  %109 = vmatpush1.msra.mxu0 0.0
  %110 = vmatprep.subr.mxu0 0.0
  %111 = vmatpush1.msra.mxu0 0.0
  %112 = vmatprep.subr.mxu0 0.0
  %113 = vmatpush1.msra.mxu0 0.0
  %114 = vmatprep.subr.mxu0 0.0
  %115 = vmatpush1.msra.mxu0 0.0
  %116 = vmatprep.subr.mxu0 0.0
  %117 = vmatpush1.msra.mxu0 0.0
  %118 = vmatprep.subr.mxu0 0.0
  %119 = vmatpush1.msra.mxu0 0.0
  %120 = vmatprep.mubr.f32.mxu0 0.0
  %121 = vmatmul.mubr.f32.gmra.mrb[0].mxu0 %v42
  %v122 = vpop.f32.mrb[0].mxu0
  %v123 = vadd.f32 %v29, %v122
  %v124 = vpop.f32.mrb[0].mxu0
  %v125 = vadd.f32 %v29, %v124
  %126 = vmatprep.mubr.f32.mxu0 0.0
  %127 = vmatmul.mubr.f32.gmra.mrb[0].mxu0 %v45
  %v128 = vpop.f32.mrb[0].mxu0
  %v129 = vadd.f32 %v34, %v128
  %v130 = vpop.f32.mrb[0].mxu0
  %v131 = vadd.f32 %v34, %v130
  %132 = vdwg.mxu0
  %133 = vmatprep.subr.mxu0 %v54
  %134 = vmatpush1.msra.mxu0 %v52
  %135 = vmatprep.subr.mxu0 0.0
  %136 = vmatpush1.msra.mxu0 0.0
  %137 = vmatprep.subr.mxu0 0.0
  %138 = vmatpush1.msra.mxu0 0.0
  %139 = vmatprep.subr.mxu0 0.0
  %140 = vmatpush1.msra.mxu0 0.0
  %141 = vmatprep.subr.mxu0 0.0
  %142 = vmatpush1.msra.mxu0 0.0
  %143 = vmatprep.subr.mxu0 0.0
  %144 = vmatpush1.msra.mxu0 0.0
  %145 = vmatprep.subr.mxu0 0.0
  %146 = vmatpush1.msra.mxu0 0.0
  %147 = vmatprep.subr.mxu0 0.0
  %148 = vmatpush1.msra.mxu0 0.0
  %149 = vmatprep.subr.mxu0 0.0
  %150 = vmatpush1.msra.mxu0 0.0
  %151 = vmatprep.subr.mxu0 0.0
  %152 = vmatpush1.msra.mxu0 0.0
  %153 = vmatprep.subr.mxu0 0.0
  %154 = vmatpush1.msra.mxu0 0.0
  %155 = vmatprep.subr.mxu0 0.0
  %156 = vmatpush1.msra.mxu0 0.0
  %157 = vmatprep.subr.mxu0 0.0
  %158 = vmatpush1.msra.mxu0 0.0
  %159 = vmatprep.subr.mxu0 0.0
  %160 = vmatpush1.msra.mxu0 0.0
  %161 = vmatprep.subr.mxu0 0.0
  %162 = vmatpush1.msra.mxu0 0.0
  %163 = vmatprep.subr.mxu0 0.0
  %164 = vmatpush1.msra.mxu0 0.0
  %165 = vmatprep.subr.mxu0 0.0
  %166 = vmatpush1.msra.mxu0 0.0
  %167 = vmatprep.subr.mxu0 0.0
  %168 = vmatpush1.msra.mxu0 0.0
  %169 = vmatprep.subr.mxu0 0.0
  %170 = vmatpush1.msra.mxu0 0.0
  %171 = vmatprep.subr.mxu0 0.0
  %172 = vmatpush1.msra.mxu0 0.0
  %173 = vmatprep.subr.mxu0 0.0
  %174 = vmatpush1.msra.mxu0 0.0
  %175 = vmatprep.subr.mxu0 0.0
  %176 = vmatpush1.msra.mxu0 0.0
  %177 = vmatprep.subr.mxu0 0.0
  %178 = vmatpush1.msra.mxu0 0.0
  %179 = vmatprep.subr.mxu0 0.0
  %180 = vmatpush1.msra.mxu0 0.0
  %181 = vmatprep.subr.mxu0 0.0
  %182 = vmatpush1.msra.mxu0 0.0
  %183 = vmatprep.subr.mxu0 0.0
  %184 = vmatpush1.msra.mxu0 0.0
  %185 = vmatprep.subr.mxu0 0.0
  %186 = vmatpush1.msra.mxu0 0.0
  %187 = vmatprep.subr.mxu0 0.0
  %188 = vmatpush1.msra.mxu0 0.0
  %189 = vmatprep.subr.mxu0 0.0
  %190 = vmatpush1.msra.mxu0 0.0
  %191 = vmatprep.subr.mxu0 0.0
  %192 = vmatpush1.msra.mxu0 0.0
  %193 = vmatprep.subr.mxu0 0.0
  %194 = vmatpush1.msra.mxu0 0.0
  %195 = vmatprep.subr.mxu0 0.0
  %196 = vmatpush1.msra.mxu0 0.0
  %197 = vmatprep.mubr.f32.mxu0 0.0
  %198 = vmatmul.mubr.f32.gmra.mrb[0].mxu0 %v42
  %v199 = vpop.f32.mrb[0].mxu0
  %v200 = vadd.f32 %v29, %v199
  %v201 = vpop.f32.mrb[0].mxu0
  %v202 = vadd.f32 %v29, %v201
  %203 = vmatprep.mubr.f32.mxu0 0.0
  %204 = vmatmul.mubr.f32.gmra.mrb[0].mxu0 %v45
  %v205 = vpop.f32.mrb[0].mxu0
  %v206 = vadd.f32 %v34, %v205
  %v207 = vpop.f32.mrb[0].mxu0
  %v208 = vadd.f32 %v34, %v207
  %209 = vdwg.mxu0
  %v210 = vmax.f32 %v123, 0.0
  %v211 = vmax.f32 %v125, 0.0
  %v212 = vmax.f32 %v200, 0.0
  %v213 = vmax.f32 %v202, 0.0
  %v214 = vmax.f32 %v129, 0.0
  %v215 = vmax.f32 %v131, 0.0
  %v216 = vmax.f32 %v206, 0.0
  %v217 = vmax.f32 %v208, 0.0
  %218 = vst [vmem:[%s5] sm:$0xff] %v214
  %219 = vst [vmem:[%s5 + $0x8] sm:$0xff] %v215
  %220 = vst [vmem:[%s5 + $0x10] sm:$0xff] %v216
  %221 = vst [vmem:[%s5 + $0x18] sm:$0xff] %v217
  %222 = vst [vmem:[#allocation2] sm:$0xff] 0.0
  %223 = vst [vmem:[#allocation2 + $0x28] sm:$0xff] 0.0
  %224 = vst [vmem:[#allocation2 + $0x30] sm:$0xf] -inf
  %225 = vst [vmem:[#allocation2 + $0x58] sm:$0xf] -inf
  %226 = vst [vmem:[#allocation2 + $0x8] sm:$0xff] %v210
  %227 = vst [vmem:[#allocation2 + $0x10] sm:$0xff] %v211
  %228 = vst [vmem:[#allocation2 + $0x18] sm:$0xff] %v212
  %229 = vst [vmem:[#allocation2 + $0x20] sm:$0xff] %v213
  %232 = vst [vmem:[#allocation2 + $0x38] sm:$0xf] %v20
  %233 = vst [vmem:[#allocation2 + $0x40] sm:$0xf] %v38
  %234 = vst [vmem:[#allocation2 + $0x48] sm:$0xf] %v21
  %235 = vst [vmem:[#allocation2 + $0x50] sm:$0xf] %v39
  %v236 = vlaneseq
  %v237 = vand.u32 %v236, 127
  %v238 = vadd.s32 %v237, 128
  %v239 = vadd.s32 %v237, 256
  %v240 = vadd.s32 %v237, 384
  %vm241 = vcmp.lt.s32.totalorder %v237, 0
  %v242 = vsub.s32 0, %v237
  %v243 = vsel %vm241, %v242, %v237
  %v244 = vshrl.u32 %v243, 5
  %v245 = vand.u32 %v243, 31
  %v246 = vsub.s32 0, %v245
  %v247 = vsel %vm241, %v246, %v245
  %vm248 = vcmp.lt.s32.totalorder %v238, 0
  %v249 = vsub.s32 0, %v238
  %v250 = vsel %vm248, %v249, %v238
  %v251 = vshrl.u32 %v250, 5
  %v252 = vand.u32 %v250, 31
  %v253 = vsub.s32 0, %v252
  %v254 = vsel %vm248, %v253, %v252
  %vm255 = vcmp.lt.s32.totalorder %v239, 0
  %v256 = vsub.s32 0, %v239
  %v257 = vsel %vm255, %v256, %v239
  %v258 = vshrl.u32 %v257, 5
  %v259 = vand.u32 %v257, 31
  %v260 = vsub.s32 0, %v259
  %v261 = vsel %vm255, %v260, %v259
  %vm262 = vcmp.lt.s32.totalorder %v240, 0
  %v263 = vsub.s32 0, %v240
  %v264 = vsel %vm262, %v263, %v240
  %v265 = vshrl.u32 %v264, 5
  %v266 = vand.u32 %v264, 31
  %v267 = vsub.s32 0, %v266
  %v268 = vsel %vm262, %v267, %v266
  %vm269 = vcmp.ne.s32.totalorder %v247, 0
  %vm270 = vcmp.ne.s32.totalorder %v254, 0
  %vm271 = vcmp.ne.s32.totalorder %v261, 0
  %vm272 = vcmp.ne.s32.totalorder %v268, 0
  %vm273 = vcmp.lt.s32.totalorder %v247, 0
  %vm274 = vcmp.lt.s32.totalorder %v254, 0
  %vm275 = vcmp.lt.s32.totalorder %v261, 0
  %vm276 = vcmp.lt.s32.totalorder %v268, 0
  %vm277 = vmand %vm273, %vm269
  %vm278 = vmand %vm274, %vm270
  %vm279 = vmand %vm275, %vm271
  %vm280 = vmand %vm276, %vm272
  %v281 = vadd.s32 %v247, 32
  %v282 = vadd.s32 %v254, 32
  %v283 = vadd.s32 %v261, 32
  %v284 = vadd.s32 %v268, 32
  %v285 = vsel %vm277, %v281, %v247
  %v286 = vsel %vm278, %v282, %v254
  %v287 = vsel %vm279, %v283, %v261
  %v288 = vsel %vm280, %v284, %v268
  %v289 = vadd.s32 %v285, 4294967292
  %v290 = vadd.s32 %v286, 4294967292
  %v291 = vadd.s32 %v287, 4294967292
  %v292 = vadd.s32 %v288, 4294967292
  %vm293 = vcmp.ge.s32.totalorder %v289, 0
  %vm294 = vcmp.ge.s32.totalorder %v290, 0
  %vm295 = vcmp.ge.s32.totalorder %v291, 0
  %vm296 = vcmp.ge.s32.totalorder %v292, 0
  %vm297 = vcmp.lt.s32.totalorder %v289, 32
  %vm298 = vcmp.lt.s32.totalorder %v290, 32
  %vm299 = vcmp.lt.s32.totalorder %v291, 32
  %vm300 = vcmp.lt.s32.totalorder %v292, 32
  %vm301 = vmand %vm293, %vm297
  %vm302 = vmand %vm294, %vm298
  %vm303 = vmand %vm295, %vm299
  %vm304 = vmand %vm296, %vm300
  %v305 = vadd.s32 %v285, 4294967294
  %v306 = vadd.s32 %v286, 4294967294
  %v307 = vadd.s32 %v287, 4294967294
  %v308 = vadd.s32 %v288, 4294967294
  %vm309 = vcmp.ge.s32.totalorder %v305, 0
  %vm310 = vcmp.ge.s32.totalorder %v306, 0
  %vm311 = vcmp.ge.s32.totalorder %v307, 0
  %vm312 = vcmp.ge.s32.totalorder %v308, 0
  %vm313 = vcmp.lt.s32.totalorder %v305, 32
  %vm314 = vcmp.lt.s32.totalorder %v306, 32
  %vm315 = vcmp.lt.s32.totalorder %v307, 32
  %vm316 = vcmp.lt.s32.totalorder %v308, 32
  %vm317 = vmand %vm309, %vm313
  %vm318 = vmand %vm310, %vm314
  %vm319 = vmand %vm311, %vm315
  %vm320 = vmand %vm312, %vm316
  %v321 = vadd.s32 %v285, 2
  %v322 = vadd.s32 %v286, 2
  %v323 = vadd.s32 %v287, 2
  %v324 = vadd.s32 %v288, 2
  %vm325 = vcmp.ge.s32.totalorder %v321, 0
  %vm326 = vcmp.ge.s32.totalorder %v322, 0
  %vm327 = vcmp.ge.s32.totalorder %v323, 0
  %vm328 = vcmp.ge.s32.totalorder %v324, 0
  %vm329 = vcmp.lt.s32.totalorder %v321, 32
  %vm330 = vcmp.lt.s32.totalorder %v322, 32
  %vm331 = vcmp.lt.s32.totalorder %v323, 32
  %vm332 = vcmp.lt.s32.totalorder %v324, 32
  %vm333 = vmand %vm325, %vm329
  %vm334 = vmand %vm326, %vm330
  %vm335 = vmand %vm327, %vm331
  %vm336 = vmand %vm328, %vm332
  %v337 = vadd.s32 %v285, 4
  %v338 = vadd.s32 %v286, 4
  %v339 = vadd.s32 %v287, 4
  %v340 = vadd.s32 %v288, 4
  %vm341 = vcmp.ge.s32.totalorder %v337, 0
  %vm342 = vcmp.ge.s32.totalorder %v338, 0
  %vm343 = vcmp.ge.s32.totalorder %v339, 0
  %vm344 = vcmp.ge.s32.totalorder %v340, 0
  %vm345 = vcmp.lt.s32.totalorder %v337, 32
  %vm346 = vcmp.lt.s32.totalorder %v338, 32
  %vm347 = vcmp.lt.s32.totalorder %v339, 32
  %vm348 = vcmp.lt.s32.totalorder %v340, 32
  %vm349 = vmand %vm341, %vm345
  %vm350 = vmand %vm342, %vm346
  %vm351 = vmand %vm343, %vm347
  %vm352 = vmand %vm344, %vm348
  %v353 = vld [vmem:[#allocation2] sm:$0xff]
  %v354 = vld [vmem:[#allocation2 + $0x8] sm:$0xff]
  %v355 = vld [vmem:[#allocation2 + $0x10] sm:$0xff]
  %v356 = vld [vmem:[#allocation2 + $0x18] sm:$0xff]
  %v357 = vld [vmem:[#allocation2 + $0x20] sm:$0xff]
  %v358 = vsel %vm301, 1, 0
  %v359 = vsel %vm302, 1, 0
  %v360 = vsel %vm303, 1, 0
  %v361 = vsel %vm304, 1, 0
  %vm362 = vcmp.eq.s32.totalorder %v358, 1
  %vm363 = vcmp.eq.s32.totalorder %v359, 1
  %vm364 = vcmp.eq.s32.totalorder %v360, 1
  %vm365 = vcmp.eq.s32.totalorder %v361, 1
  %371 = vrot.lane.b32.xlu0 %v353, 68
  %v372 = vpop.permute.xlu0 %371
  %373 = vrot.lane.b32.xlu0 %v354, 68
  %v374 = vpop.permute.xlu0 %373
  %375 = vrot.lane.b32.xlu0 %v355, 68
  %v376 = vpop.permute.xlu0 %375
  %377 = vrot.lane.b32.xlu0 %v356, 68
  %v378 = vpop.permute.xlu0 %377
  %379 = vrot.lane.b32.xlu0 %v357, 68
  %v380 = vpop.permute.xlu0 %379
  %vm381 = vcmask 556032
  %v382 = vsel %vm381, %v372, %v374
  %v383 = vsel %vm381, %v374, %v376
  %v384 = vsel %vm381, %v376, %v378
  %v385 = vsel %vm381, %v378, %v380
  %v390 = vsel %vm362, %v382, 0.0
  %v391 = vsel %vm363, %v383, 0.0
  %v392 = vsel %vm364, %v384, 0.0
  %v393 = vsel %vm365, %v385, 0.0
  %394 = vst [vmem:[#allocation3] sm:$0xff] %v390
  %395 = vst [vmem:[#allocation3 + $0x8] sm:$0xff] %v391
  %396 = vst [vmem:[#allocation3 + $0x10] sm:$0xff] %v392
  %397 = vst [vmem:[#allocation3 + $0x18] sm:$0xff] %v393
  %v398 = vld [vmem:[#allocation2] sm:$0xff]
  %v399 = vld [vmem:[#allocation2 + $0x8] sm:$0xff]
  %v400 = vld [vmem:[#allocation2 + $0x10] sm:$0xff]
  %v401 = vld [vmem:[#allocation2 + $0x18] sm:$0xff]
  %v402 = vld [vmem:[#allocation2 + $0x20] sm:$0xff]
  %v403 = vsel %vm317, 1, 0
  %v404 = vsel %vm318, 1, 0
  %v405 = vsel %vm319, 1, 0
  %v406 = vsel %vm320, 1, 0
  %vm407 = vcmp.eq.s32.totalorder %v403, 1
  %vm408 = vcmp.eq.s32.totalorder %v404, 1
  %vm409 = vcmp.eq.s32.totalorder %v405, 1
  %vm410 = vcmp.eq.s32.totalorder %v406, 1
  %416 = vrot.lane.b32.xlu0 %v398, 66
  %v417 = vpop.permute.xlu0 %416
  %418 = vrot.lane.b32.xlu0 %v399, 66
  %v419 = vpop.permute.xlu0 %418
  %420 = vrot.lane.b32.xlu0 %v400, 66
  %v421 = vpop.permute.xlu0 %420
  %422 = vrot.lane.b32.xlu0 %v401, 66
  %v423 = vpop.permute.xlu0 %422
  %424 = vrot.lane.b32.xlu0 %v402, 66
  %v425 = vpop.permute.xlu0 %424
  %vm426 = vcmask 539648
  %v427 = vsel %vm426, %v417, %v419
  %v428 = vsel %vm426, %v419, %v421
  %v429 = vsel %vm426, %v421, %v423
  %v430 = vsel %vm426, %v423, %v425
  %v435 = vsel %vm407, %v427, 0.0
  %v436 = vsel %vm408, %v428, 0.0
  %v437 = vsel %vm409, %v429, 0.0
  %v438 = vsel %vm410, %v430, 0.0
  %439 = vst [vmem:[#allocation3 + $0x20] sm:$0xff] %v435
  %440 = vst [vmem:[#allocation3 + $0x28] sm:$0xff] %v436
  %441 = vst [vmem:[#allocation3 + $0x30] sm:$0xff] %v437
  %442 = vst [vmem:[#allocation3 + $0x38] sm:$0xff] %v438
  %v443 = vld [vmem:[#allocation2] sm:$0xff]
  %v444 = vld [vmem:[#allocation2 + $0x8] sm:$0xff]
  %v445 = vld [vmem:[#allocation2 + $0x10] sm:$0xff]
  %v446 = vld [vmem:[#allocation2 + $0x18] sm:$0xff]
  %v447 = vld [vmem:[#allocation2 + $0x20] sm:$0xff]
  %453 = vrot.lane.b32.xlu0 %v443, 64
  %v454 = vpop.permute.xlu0 %453
  %455 = vrot.lane.b32.xlu0 %v444, 64
  %v456 = vpop.permute.xlu0 %455
  %457 = vrot.lane.b32.xlu0 %v445, 64
  %v458 = vpop.permute.xlu0 %457
  %459 = vrot.lane.b32.xlu0 %v446, 64
  %v460 = vpop.permute.xlu0 %459
  %461 = vrot.lane.b32.xlu0 %v447, 64
  %v462 = vpop.permute.xlu0 %461
  %vm463 = vcmask 523264
  %v464 = vsel %vm463, %v454, %v456
  %v465 = vsel %vm463, %v456, %v458
  %v466 = vsel %vm463, %v458, %v460
  %v467 = vsel %vm463, %v460, %v462
  %472 = vst [vmem:[#allocation3 + $0x40] sm:$0xff] %v464
  %473 = vst [vmem:[#allocation3 + $0x48] sm:$0xff] %v465
  %474 = vst [vmem:[#allocation3 + $0x50] sm:$0xff] %v466
  %475 = vst [vmem:[#allocation3 + $0x58] sm:$0xff] %v467
  %v476 = vld [vmem:[#allocation2] sm:$0xff]
  %v477 = vld [vmem:[#allocation2 + $0x8] sm:$0xff]
  %v478 = vld [vmem:[#allocation2 + $0x10] sm:$0xff]
  %v479 = vld [vmem:[#allocation2 + $0x18] sm:$0xff]
  %v480 = vld [vmem:[#allocation2 + $0x20] sm:$0xff]
  %v481 = vsel %vm333, 1, 0
  %v482 = vsel %vm334, 1, 0
  %v483 = vsel %vm335, 1, 0
  %v484 = vsel %vm336, 1, 0
  %vm485 = vcmp.eq.s32.totalorder %v481, 1
  %vm486 = vcmp.eq.s32.totalorder %v482, 1
  %vm487 = vcmp.eq.s32.totalorder %v483, 1
  %vm488 = vcmp.eq.s32.totalorder %v484, 1
  %494 = vrot.lane.b32.xlu0 %v476, 62
  %v495 = vpop.permute.xlu0 %494
  %496 = vrot.lane.b32.xlu0 %v477, 62
  %v497 = vpop.permute.xlu0 %496
  %498 = vrot.lane.b32.xlu0 %v478, 62
  %v499 = vpop.permute.xlu0 %498
  %500 = vrot.lane.b32.xlu0 %v479, 62
  %v501 = vpop.permute.xlu0 %500
  %502 = vrot.lane.b32.xlu0 %v480, 62
  %v503 = vpop.permute.xlu0 %502
  %vm504 = vcmask 506880
  %v505 = vsel %vm504, %v495, %v497
  %v506 = vsel %vm504, %v497, %v499
  %v507 = vsel %vm504, %v499, %v501
  %v508 = vsel %vm504, %v501, %v503
  %v513 = vsel %vm485, %v505, 0.0
  %v514 = vsel %vm486, %v506, 0.0
  %v515 = vsel %vm487, %v507, 0.0
  %v516 = vsel %vm488, %v508, 0.0
  %517 = vst [vmem:[#allocation3 + $0x60] sm:$0xff] %v513
  %518 = vst [vmem:[#allocation3 + $0x68] sm:$0xff] %v514
  %519 = vst [vmem:[#allocation3 + $0x70] sm:$0xff] %v515
  %520 = vst [vmem:[#allocation3 + $0x78] sm:$0xff] %v516
  %v521 = vld [vmem:[#allocation2] sm:$0xff]
  %v522 = vld [vmem:[#allocation2 + $0x8] sm:$0xff]
  %v523 = vld [vmem:[#allocation2 + $0x10] sm:$0xff]
  %v524 = vld [vmem:[#allocation2 + $0x18] sm:$0xff]
  %v525 = vld [vmem:[#allocation2 + $0x20] sm:$0xff]
  %v526 = vsel %vm349, 1, 0
  %v527 = vsel %vm350, 1, 0
  %v528 = vsel %vm351, 1, 0
  %v529 = vsel %vm352, 1, 0
  %vm530 = vcmp.eq.s32.totalorder %v526, 1
  %vm531 = vcmp.eq.s32.totalorder %v527, 1
  %vm532 = vcmp.eq.s32.totalorder %v528, 1
  %vm533 = vcmp.eq.s32.totalorder %v529, 1
  %539 = vrot.lane.b32.xlu0 %v521, 60
  %v540 = vpop.permute.xlu0 %539
  %541 = vrot.lane.b32.xlu0 %v522, 60
  %v542 = vpop.permute.xlu0 %541
  %543 = vrot.lane.b32.xlu0 %v523, 60
  %v544 = vpop.permute.xlu0 %543
  %545 = vrot.lane.b32.xlu0 %v524, 60
  %v546 = vpop.permute.xlu0 %545
  %547 = vrot.lane.b32.xlu0 %v525, 60
  %v548 = vpop.permute.xlu0 %547
  %vm549 = vcmask 490496
  %v550 = vsel %vm549, %v540, %v542
  %v551 = vsel %vm549, %v542, %v544
  %v552 = vsel %vm549, %v544, %v546
  %v553 = vsel %vm549, %v546, %v548
  %v558 = vsel %vm530, %v550, 0.0
  %v559 = vsel %vm531, %v551, 0.0
  %v560 = vsel %vm532, %v552, 0.0
  %v561 = vsel %vm533, %v553, 0.0
  %562 = vst [vmem:[#allocation3 + $0x80] sm:$0xff] %v558
  %563 = vst [vmem:[#allocation3 + $0x88] sm:$0xff] %v559
  %564 = vst [vmem:[#allocation3 + $0x90] sm:$0xff] %v560
  %565 = vst [vmem:[#allocation3 + $0x98] sm:$0xff] %v561
  %v566 = vld [vmem:[#allocation2] sm:$0xff]
  %v567 = vld [vmem:[#allocation2 + $0x8] sm:$0xff]
  %v568 = vld [vmem:[#allocation2 + $0x10] sm:$0xff]
  %v569 = vld [vmem:[#allocation2 + $0x18] sm:$0xff]
  %v570 = vld [vmem:[#allocation2 + $0x20] sm:$0xff]
  %576 = vrot.lane.b32.xlu0 %v566, 36
  %v577 = vpop.permute.xlu0 %576
  %578 = vrot.lane.b32.xlu0 %v567, 36
  %v579 = vpop.permute.xlu0 %578
  %580 = vrot.lane.b32.xlu0 %v568, 36
  %v581 = vpop.permute.xlu0 %580
  %582 = vrot.lane.b32.xlu0 %v569, 36
  %v583 = vpop.permute.xlu0 %582
  %584 = vrot.lane.b32.xlu0 %v570, 36
  %v585 = vpop.permute.xlu0 %584
  %vm586 = vcmask 293888
  %v587 = vsel %vm586, %v577, %v579
  %v588 = vsel %vm586, %v579, %v581
  %v589 = vsel %vm586, %v581, %v583
  %v590 = vsel %vm586, %v583, %v585
  %v595 = vsel %vm362, %v587, 0.0
  %v596 = vsel %vm363, %v588, 0.0
  %v597 = vsel %vm364, %v589, 0.0
  %v598 = vsel %vm365, %v590, 0.0
  %599 = vst [vmem:[#allocation3 + $0xa0] sm:$0xff] %v595
  %600 = vst [vmem:[#allocation3 + $0xa8] sm:$0xff] %v596
  %601 = vst [vmem:[#allocation3 + $0xb0] sm:$0xff] %v597
  %602 = vst [vmem:[#allocation3 + $0xb8] sm:$0xff] %v598
  %v603 = vld [vmem:[#allocation2] sm:$0xff]
  %v604 = vld [vmem:[#allocation2 + $0x8] sm:$0xff]
  %v605 = vld [vmem:[#allocation2 + $0x10] sm:$0xff]
  %v606 = vld [vmem:[#allocation2 + $0x18] sm:$0xff]
  %v607 = vld [vmem:[#allocation2 + $0x20] sm:$0xff]
  %v608 = vld [vmem:[#allocation2 + $0x30] sm:$0xf]
  %v609 = vld [vmem:[#allocation2 + $0x38] sm:$0xf]
  %v610 = vld [vmem:[#allocation2 + $0x40] sm:$0xf]
  %v611 = vld [vmem:[#allocation2 + $0x48] sm:$0xf]
  %v612 = vld [vmem:[#allocation2 + $0x50] sm:$0xf]
  %614 = vset.pattern.permute.xlu0 0
  %615 = vperm.xlu0 %614, 0.0
  %v616 = vpop.permute.xlu0 %615
  %619 = vset.pattern.permute.xlu0 0
  %620 = vperm.xlu0 %619, -inf
  %v621 = vpop.permute.xlu0 %620
  %633 = vrot.lane.b32.xlu0 %v603, 34
  %v634 = vpop.permute.xlu0 %633
  %635 = vrot.lane.b32.xlu0 %v604, 34
  %v636 = vpop.permute.xlu0 %635
  %637 = vrot.lane.b32.xlu0 %v605, 34
  %v638 = vpop.permute.xlu0 %637
  %639 = vrot.lane.b32.xlu0 %v606, 34
  %v640 = vpop.permute.xlu0 %639
  %641 = vrot.lane.b32.xlu0 %v607, 34
  %v642 = vpop.permute.xlu0 %641
  %643 = vrot.lane.b32.xlu0 %v608, 34
  %v644 = vpop.permute.xlu0 %643
  %645 = vrot.lane.b32.xlu0 %v609, 34
  %v646 = vpop.permute.xlu0 %645
  %647 = vrot.lane.b32.xlu0 %v610, 34
  %v648 = vpop.permute.xlu0 %647
  %649 = vrot.lane.b32.xlu0 %v611, 34
  %v650 = vpop.permute.xlu0 %649
  %651 = vrot.lane.b32.xlu0 %v612, 34
  %v652 = vpop.permute.xlu0 %651
  %vm653 = vcmask 277504
  %v654 = vsel %vm653, %v634, %v636
  %v655 = vsel %vm653, %v636, %v638
  %v656 = vsel %vm653, %v638, %v640
  %v657 = vsel %vm653, %v640, %v642
  %v658 = vsel %vm653, %v644, %v646
  %v659 = vsel %vm653, %v646, %v648
  %v660 = vsel %vm653, %v648, %v650
  %v661 = vsel %vm653, %v650, %v652
  %v670 = vsel %vm407, %v654, %v616
  %v671 = vsel %vm408, %v655, %v616
  %v672 = vsel %vm409, %v656, %v616
  %v673 = vsel %vm410, %v657, %v616
  %v674 = vsel %vm407, %v658, %v621
  %v675 = vsel %vm408, %v659, %v621
  %v676 = vsel %vm409, %v660, %v621
  %v677 = vsel %vm410, %v661, %v621
  %678 = vst [vmem:[#allocation3 + $0xc0] sm:$0xff] %v670
  %679 = vst [vmem:[#allocation3 + $0xc8] sm:$0xff] %v671
  %680 = vst [vmem:[#allocation3 + $0xd0] sm:$0xff] %v672
  %681 = vst [vmem:[#allocation3 + $0xd8] sm:$0xff] %v673
  %v686 = vcombine.low %v674, %v675
  %v687 = vcombine.low %v676, %v677
  %v690 = vmax.f32 %v20, %v686
  %v691 = vmax.f32 %v21, %v687
  %v692 = vld [vmem:[#allocation2] sm:$0xff]
  %v693 = vld [vmem:[#allocation2 + $0x8] sm:$0xff]
  %v694 = vld [vmem:[#allocation2 + $0x10] sm:$0xff]
  %v695 = vld [vmem:[#allocation2 + $0x18] sm:$0xff]
  %v696 = vld [vmem:[#allocation2 + $0x20] sm:$0xff]
  %v697 = vld [vmem:[#allocation2 + $0x30] sm:$0xf]
  %v698 = vld [vmem:[#allocation2 + $0x38] sm:$0xf]
  %v699 = vld [vmem:[#allocation2 + $0x40] sm:$0xf]
  %v700 = vld [vmem:[#allocation2 + $0x48] sm:$0xf]
  %v701 = vld [vmem:[#allocation2 + $0x50] sm:$0xf]
  %707 = vrot.lane.b32.xlu0 %v692, 32
  %v708 = vpop.permute.xlu0 %707
  %709 = vrot.lane.b32.xlu0 %v693, 32
  %v710 = vpop.permute.xlu0 %709
  %711 = vrot.lane.b32.xlu0 %v694, 32
  %v712 = vpop.permute.xlu0 %711
  %713 = vrot.lane.b32.xlu0 %v695, 32
  %v714 = vpop.permute.xlu0 %713
  %715 = vrot.lane.b32.xlu0 %v696, 32
  %v716 = vpop.permute.xlu0 %715
  %vm717 = vcmask 261120
  %v718 = vsel %vm717, %v708, %v710
  %v719 = vsel %vm717, %v710, %v712
  %v720 = vsel %vm717, %v712, %v714
  %v721 = vsel %vm717, %v714, %v716
  %726 = vst [vmem:[#allocation3 + $0xe0] sm:$0xff] %v718
  %727 = vst [vmem:[#allocation3 + $0xe8] sm:$0xff] %v719
  %728 = vst [vmem:[#allocation3 + $0xf0] sm:$0xff] %v720
  %729 = vst [vmem:[#allocation3 + $0xf8] sm:$0xff] %v721
  %v735 = vcombine.low %v697, %v698
  %v736 = vcombine.low %v699, %v700
  %737 = vrot.lane.b32.xlu0 %v735, 32
  %v738 = vpop.permute.xlu0 %737
  %739 = vrot.lane.b32.xlu0 %v736, 32
  %v740 = vpop.permute.xlu0 %739
  %741 = vrot.lane.b32.xlu0 %v701, 32
  %v742 = vpop.permute.xlu0 %741
  %v743 = vrot.slane %v738, 4
  %v744 = vrot.slane %v740, 4
  %v745 = vrot.slane %v742, 4
  %v746 = vsel %vm47, %v743, %v744
  %v747 = vsel %vm717, %v738, %v746
  %v748 = vsel %vm47, %v744, %v745
  %v749 = vsel %vm717, %v740, %v748
  %v752 = vmax.f32 %v690, %v747
  %v753 = vmax.f32 %v691, %v749
  %v754 = vld [vmem:[#allocation2] sm:$0xff]
  %v755 = vld [vmem:[#allocation2 + $0x8] sm:$0xff]
  %v756 = vld [vmem:[#allocation2 + $0x10] sm:$0xff]
  %v757 = vld [vmem:[#allocation2 + $0x18] sm:$0xff]
  %v758 = vld [vmem:[#allocation2 + $0x20] sm:$0xff]
  %v759 = vld [vmem:[#allocation2 + $0x30] sm:$0xf]
  %v760 = vld [vmem:[#allocation2 + $0x38] sm:$0xf]
  %v761 = vld [vmem:[#allocation2 + $0x40] sm:$0xf]
  %v762 = vld [vmem:[#allocation2 + $0x48] sm:$0xf]
  %v763 = vld [vmem:[#allocation2 + $0x50] sm:$0xf]
  %774 = vrot.lane.b32.xlu0 %v754, 30
  %v775 = vpop.permute.xlu0 %774
  %776 = vrot.lane.b32.xlu0 %v755, 30
  %v777 = vpop.permute.xlu0 %776
  %778 = vrot.lane.b32.xlu0 %v756, 30
  %v779 = vpop.permute.xlu0 %778
  %780 = vrot.lane.b32.xlu0 %v757, 30
  %v781 = vpop.permute.xlu0 %780
  %782 = vrot.lane.b32.xlu0 %v758, 30
  %v783 = vpop.permute.xlu0 %782
  %784 = vrot.lane.b32.xlu0 %v759, 30
  %v785 = vpop.permute.xlu0 %784
  %786 = vrot.lane.b32.xlu0 %v760, 30
  %v787 = vpop.permute.xlu0 %786
  %788 = vrot.lane.b32.xlu0 %v761, 30
  %v789 = vpop.permute.xlu0 %788
  %790 = vrot.lane.b32.xlu0 %v762, 30
  %v791 = vpop.permute.xlu0 %790
  %792 = vrot.lane.b32.xlu0 %v763, 30
  %v793 = vpop.permute.xlu0 %792
  %vm794 = vcmask 244736
  %v795 = vsel %vm794, %v775, %v777
  %v796 = vsel %vm794, %v777, %v779
  %v797 = vsel %vm794, %v779, %v781
  %v798 = vsel %vm794, %v781, %v783
  %v799 = vsel %vm794, %v785, %v787
  %v800 = vsel %vm794, %v787, %v789
  %v801 = vsel %vm794, %v789, %v791
  %v802 = vsel %vm794, %v791, %v793
  %v811 = vsel %vm485, %v795, %v616
  %v812 = vsel %vm486, %v796, %v616
  %v813 = vsel %vm487, %v797, %v616
  %v814 = vsel %vm488, %v798, %v616
  %v815 = vsel %vm485, %v799, %v621
  %v816 = vsel %vm486, %v800, %v621
  %v817 = vsel %vm487, %v801, %v621
  %v818 = vsel %vm488, %v802, %v621
  %819 = vst [vmem:[#allocation3 + $0x100] sm:$0xff] %v811
  %820 = vst [vmem:[#allocation3 + $0x108] sm:$0xff] %v812
  %821 = vst [vmem:[#allocation3 + $0x110] sm:$0xff] %v813
  %822 = vst [vmem:[#allocation3 + $0x118] sm:$0xff] %v814
  %v827 = vcombine.low %v815, %v816
  %v828 = vcombine.low %v817, %v818
  %v831 = vmax.f32 %v752, %v827
  %v832 = vmax.f32 %v753, %v828
  %v833 = vld [vmem:[#allocation2] sm:$0xff]
  %v834 = vld [vmem:[#allocation2 + $0x8] sm:$0xff]
  %v835 = vld [vmem:[#allocation2 + $0x10] sm:$0xff]
  %v836 = vld [vmem:[#allocation2 + $0x18] sm:$0xff]
  %v837 = vld [vmem:[#allocation2 + $0x20] sm:$0xff]
  %843 = vrot.lane.b32.xlu0 %v833, 28
  %v844 = vpop.permute.xlu0 %843
  %845 = vrot.lane.b32.xlu0 %v834, 28
  %v846 = vpop.permute.xlu0 %845
  %847 = vrot.lane.b32.xlu0 %v835, 28
  %v848 = vpop.permute.xlu0 %847
  %849 = vrot.lane.b32.xlu0 %v836, 28
  %v850 = vpop.permute.xlu0 %849
  %851 = vrot.lane.b32.xlu0 %v837, 28
  %v852 = vpop.permute.xlu0 %851
  %vm853 = vcmask 228352
  %v854 = vsel %vm853, %v844, %v846
  %v855 = vsel %vm853, %v846, %v848
  %v856 = vsel %vm853, %v848, %v850
  %v857 = vsel %vm853, %v850, %v852
  %v862 = vsel %vm530, %v854, 0.0
  %v863 = vsel %vm531, %v855, 0.0
  %v864 = vsel %vm532, %v856, 0.0
  %v865 = vsel %vm533, %v857, 0.0
  %866 = vst [vmem:[#allocation3 + $0x120] sm:$0xff] %v862
  %867 = vst [vmem:[#allocation3 + $0x128] sm:$0xff] %v863
  %868 = vst [vmem:[#allocation3 + $0x130] sm:$0xff] %v864
  %869 = vst [vmem:[#allocation3 + $0x138] sm:$0xff] %v865
  %v870 = vld [vmem:[#allocation2] sm:$0xff]
  %v871 = vld [vmem:[#allocation2 + $0x8] sm:$0xff]
  %v872 = vld [vmem:[#allocation2 + $0x10] sm:$0xff]
  %v873 = vld [vmem:[#allocation2 + $0x18] sm:$0xff]
  %v874 = vld [vmem:[#allocation2 + $0x20] sm:$0xff]
  %880 = vrot.lane.b32.xlu0 %v870, 4
  %v881 = vpop.permute.xlu0 %880
  %882 = vrot.lane.b32.xlu0 %v871, 4
  %v883 = vpop.permute.xlu0 %882
  %884 = vrot.lane.b32.xlu0 %v872, 4
  %v885 = vpop.permute.xlu0 %884
  %886 = vrot.lane.b32.xlu0 %v873, 4
  %v887 = vpop.permute.xlu0 %886
  %888 = vrot.lane.b32.xlu0 %v874, 4
  %v889 = vpop.permute.xlu0 %888
  %v890 = vsel %vm40, %v881, %v883
  %v891 = vsel %vm40, %v883, %v885
  %v892 = vsel %vm40, %v885, %v887
  %v893 = vsel %vm40, %v887, %v889
  %v898 = vsel %vm362, %v890, 0.0
  %v899 = vsel %vm363, %v891, 0.0
  %v900 = vsel %vm364, %v892, 0.0
  %v901 = vsel %vm365, %v893, 0.0
  %902 = vst [vmem:[#allocation3 + $0x140] sm:$0xff] %v898
  %903 = vst [vmem:[#allocation3 + $0x148] sm:$0xff] %v899
  %904 = vst [vmem:[#allocation3 + $0x150] sm:$0xff] %v900
  %905 = vst [vmem:[#allocation3 + $0x158] sm:$0xff] %v901
  %v906 = vld [vmem:[#allocation2] sm:$0xff]
  %v907 = vld [vmem:[#allocation2 + $0x8] sm:$0xff]
  %v908 = vld [vmem:[#allocation2 + $0x10] sm:$0xff]
  %v909 = vld [vmem:[#allocation2 + $0x18] sm:$0xff]
  %v910 = vld [vmem:[#allocation2 + $0x20] sm:$0xff]
  %v911 = vld [vmem:[#allocation2 + $0x30] sm:$0xf]
  %v912 = vld [vmem:[#allocation2 + $0x38] sm:$0xf]
  %v913 = vld [vmem:[#allocation2 + $0x40] sm:$0xf]
  %v914 = vld [vmem:[#allocation2 + $0x48] sm:$0xf]
  %v915 = vld [vmem:[#allocation2 + $0x50] sm:$0xf]
  %926 = vrot.lane.b32.xlu0 %v906, 2
  %v927 = vpop.permute.xlu0 %926
  %928 = vrot.lane.b32.xlu0 %v907, 2
  %v929 = vpop.permute.xlu0 %928
  %930 = vrot.lane.b32.xlu0 %v908, 2
  %v931 = vpop.permute.xlu0 %930
  %932 = vrot.lane.b32.xlu0 %v909, 2
  %v933 = vpop.permute.xlu0 %932
  %934 = vrot.lane.b32.xlu0 %v910, 2
  %v935 = vpop.permute.xlu0 %934
  %936 = vrot.lane.b32.xlu0 %v911, 2
  %v937 = vpop.permute.xlu0 %936
  %938 = vrot.lane.b32.xlu0 %v912, 2
  %v939 = vpop.permute.xlu0 %938
  %940 = vrot.lane.b32.xlu0 %v913, 2
  %v941 = vpop.permute.xlu0 %940
  %942 = vrot.lane.b32.xlu0 %v914, 2
  %v943 = vpop.permute.xlu0 %942
  %944 = vrot.lane.b32.xlu0 %v915, 2
  %v945 = vpop.permute.xlu0 %944
  %vm946 = vcmask 15360
  %v947 = vsel %vm946, %v927, %v929
  %v948 = vsel %vm946, %v929, %v931
  %v949 = vsel %vm946, %v931, %v933
  %v950 = vsel %vm946, %v933, %v935
  %v951 = vsel %vm946, %v937, %v939
  %v952 = vsel %vm946, %v939, %v941
  %v953 = vsel %vm946, %v941, %v943
  %v954 = vsel %vm946, %v943, %v945
  %v963 = vsel %vm407, %v947, %v616
  %v964 = vsel %vm408, %v948, %v616
  %v965 = vsel %vm409, %v949, %v616
  %v966 = vsel %vm410, %v950, %v616
  %v967 = vsel %vm407, %v951, %v621
  %v968 = vsel %vm408, %v952, %v621
  %v969 = vsel %vm409, %v953, %v621
  %v970 = vsel %vm410, %v954, %v621
  %971 = vst [vmem:[#allocation3 + $0x160] sm:$0xff] %v963
  %972 = vst [vmem:[#allocation3 + $0x168] sm:$0xff] %v964
  %973 = vst [vmem:[#allocation3 + $0x170] sm:$0xff] %v965
  %974 = vst [vmem:[#allocation3 + $0x178] sm:$0xff] %v966
  %v979 = vcombine.low %v967, %v968
  %v980 = vcombine.low %v969, %v970
  %v983 = vmax.f32 %v831, %v979
  %v984 = vmax.f32 %v832, %v980
  %v985 = vld [vmem:[#allocation2 + $0x8] sm:$0xff]
  %v986 = vld [vmem:[#allocation2 + $0x10] sm:$0xff]
  %v987 = vld [vmem:[#allocation2 + $0x18] sm:$0xff]
  %v988 = vld [vmem:[#allocation2 + $0x20] sm:$0xff]
  %989 = vst [vmem:[#allocation3 + $0x180] sm:$0xff] %v985
  %990 = vst [vmem:[#allocation3 + $0x188] sm:$0xff] %v986
  %991 = vst [vmem:[#allocation3 + $0x190] sm:$0xff] %v987
  %992 = vst [vmem:[#allocation3 + $0x198] sm:$0xff] %v988
  %v993 = vld [vmem:[#allocation2 + $0x8] sm:$0xff]
  %v994 = vld [vmem:[#allocation2 + $0x10] sm:$0xff]
  %v995 = vld [vmem:[#allocation2 + $0x18] sm:$0xff]
  %v996 = vld [vmem:[#allocation2 + $0x20] sm:$0xff]
  %v997 = vld [vmem:[#allocation2 + $0x28] sm:$0xff]
  %v998 = vld [vmem:[#allocation2 + $0x38] sm:$0xf]
  %v999 = vld [vmem:[#allocation2 + $0x40] sm:$0xf]
  %v1000 = vld [vmem:[#allocation2 + $0x48] sm:$0xf]
  %v1001 = vld [vmem:[#allocation2 + $0x50] sm:$0xf]
  %v1002 = vld [vmem:[#allocation2 + $0x58] sm:$0xf]
  %1013 = vrot.lane.b32.xlu0 %v993, 126
  %v1014 = vpop.permute.xlu0 %1013
  %1015 = vrot.lane.b32.xlu0 %v994, 126
  %v1016 = vpop.permute.xlu0 %1015
  %1017 = vrot.lane.b32.xlu0 %v995, 126
  %v1018 = vpop.permute.xlu0 %1017
  %1019 = vrot.lane.b32.xlu0 %v996, 126
  %v1020 = vpop.permute.xlu0 %1019
  %1021 = vrot.lane.b32.xlu0 %v997, 126
  %v1022 = vpop.permute.xlu0 %1021
  %1023 = vrot.lane.b32.xlu0 %v998, 126
  %v1024 = vpop.permute.xlu0 %1023
  %1025 = vrot.lane.b32.xlu0 %v999, 126
  %v1026 = vpop.permute.xlu0 %1025
  %1027 = vrot.lane.b32.xlu0 %v1000, 126
  %v1028 = vpop.permute.xlu0 %1027
  %1029 = vrot.lane.b32.xlu0 %v1001, 126
  %v1030 = vpop.permute.xlu0 %1029
  %1031 = vrot.lane.b32.xlu0 %v1002, 126
  %v1032 = vpop.permute.xlu0 %1031
  %vm1033 = vcmask 1031168
  %v1034 = vsel %vm1033, %v1014, %v1016
  %v1035 = vsel %vm1033, %v1016, %v1018
  %v1036 = vsel %vm1033, %v1018, %v1020
  %v1037 = vsel %vm1033, %v1020, %v1022
  %v1038 = vsel %vm1033, %v1024, %v1026
  %v1039 = vsel %vm1033, %v1026, %v1028
  %v1040 = vsel %vm1033, %v1028, %v1030
  %v1041 = vsel %vm1033, %v1030, %v1032
  %v1050 = vsel %vm485, %v1034, %v616
  %v1051 = vsel %vm486, %v1035, %v616
  %v1052 = vsel %vm487, %v1036, %v616
  %v1053 = vsel %vm488, %v1037, %v616
  %v1054 = vsel %vm485, %v1038, %v621
  %v1055 = vsel %vm486, %v1039, %v621
  %v1056 = vsel %vm487, %v1040, %v621
  %v1057 = vsel %vm488, %v1041, %v621
  %1058 = vst [vmem:[#allocation3 + $0x1a0] sm:$0xff] %v1050
  %1059 = vst [vmem:[#allocation3 + $0x1a8] sm:$0xff] %v1051
  %1060 = vst [vmem:[#allocation3 + $0x1b0] sm:$0xff] %v1052
  %1061 = vst [vmem:[#allocation3 + $0x1b8] sm:$0xff] %v1053
  %v1066 = vcombine.low %v1054, %v1055
  %v1067 = vcombine.low %v1056, %v1057
  %v1070 = vmax.f32 %v983, %v1066
  %v1071 = vmax.f32 %v984, %v1067
  %v1072 = vld [vmem:[#allocation2 + $0x8] sm:$0xff]
  %v1073 = vld [vmem:[#allocation2 + $0x10] sm:$0xff]
  %v1074 = vld [vmem:[#allocation2 + $0x18] sm:$0xff]
  %v1075 = vld [vmem:[#allocation2 + $0x20] sm:$0xff]
  %v1076 = vld [vmem:[#allocation2 + $0x28] sm:$0xff]
  %1082 = vrot.lane.b32.xlu0 %v1072, 124
  %v1083 = vpop.permute.xlu0 %1082
  %1084 = vrot.lane.b32.xlu0 %v1073, 124
  %v1085 = vpop.permute.xlu0 %1084
  %1086 = vrot.lane.b32.xlu0 %v1074, 124
  %v1087 = vpop.permute.xlu0 %1086
  %1088 = vrot.lane.b32.xlu0 %v1075, 124
  %v1089 = vpop.permute.xlu0 %1088
  %1090 = vrot.lane.b32.xlu0 %v1076, 124
  %v1091 = vpop.permute.xlu0 %1090
  %vm1092 = vcmask 1014784
  %v1093 = vsel %vm1092, %v1083, %v1085
  %v1094 = vsel %vm1092, %v1085, %v1087
  %v1095 = vsel %vm1092, %v1087, %v1089
  %v1096 = vsel %vm1092, %v1089, %v1091
  %v1101 = vsel %vm530, %v1093, 0.0
  %v1102 = vsel %vm531, %v1094, 0.0
  %v1103 = vsel %vm532, %v1095, 0.0
  %v1104 = vsel %vm533, %v1096, 0.0
  %1105 = vst [vmem:[#allocation3 + $0x1c0] sm:$0xff] %v1101
  %1106 = vst [vmem:[#allocation3 + $0x1c8] sm:$0xff] %v1102
  %1107 = vst [vmem:[#allocation3 + $0x1d0] sm:$0xff] %v1103
  %1108 = vst [vmem:[#allocation3 + $0x1d8] sm:$0xff] %v1104
  %v1109 = vld [vmem:[#allocation2 + $0x8] sm:$0xff]
  %v1110 = vld [vmem:[#allocation2 + $0x10] sm:$0xff]
  %v1111 = vld [vmem:[#allocation2 + $0x18] sm:$0xff]
  %v1112 = vld [vmem:[#allocation2 + $0x20] sm:$0xff]
  %v1113 = vld [vmem:[#allocation2 + $0x28] sm:$0xff]
  %1119 = vrot.lane.b32.xlu0 %v1109, 100
  %v1120 = vpop.permute.xlu0 %1119
  %1121 = vrot.lane.b32.xlu0 %v1110, 100
  %v1122 = vpop.permute.xlu0 %1121
  %1123 = vrot.lane.b32.xlu0 %v1111, 100
  %v1124 = vpop.permute.xlu0 %1123
  %1125 = vrot.lane.b32.xlu0 %v1112, 100
  %v1126 = vpop.permute.xlu0 %1125
  %1127 = vrot.lane.b32.xlu0 %v1113, 100
  %v1128 = vpop.permute.xlu0 %1127
  %vm1129 = vcmask 818176
  %v1130 = vsel %vm1129, %v1120, %v1122
  %v1131 = vsel %vm1129, %v1122, %v1124
  %v1132 = vsel %vm1129, %v1124, %v1126
  %v1133 = vsel %vm1129, %v1126, %v1128
  %v1138 = vsel %vm362, %v1130, 0.0
  %v1139 = vsel %vm363, %v1131, 0.0
  %v1140 = vsel %vm364, %v1132, 0.0
  %v1141 = vsel %vm365, %v1133, 0.0
  %1142 = vst [vmem:[#allocation3 + $0x1e0] sm:$0xff] %v1138
  %1143 = vst [vmem:[#allocation3 + $0x1e8] sm:$0xff] %v1139
  %1144 = vst [vmem:[#allocation3 + $0x1f0] sm:$0xff] %v1140
  %1145 = vst [vmem:[#allocation3 + $0x1f8] sm:$0xff] %v1141
  %v1146 = vld [vmem:[#allocation2 + $0x8] sm:$0xff]
  %v1147 = vld [vmem:[#allocation2 + $0x10] sm:$0xff]
  %v1148 = vld [vmem:[#allocation2 + $0x18] sm:$0xff]
  %v1149 = vld [vmem:[#allocation2 + $0x20] sm:$0xff]
  %v1150 = vld [vmem:[#allocation2 + $0x28] sm:$0xff]
  %v1151 = vld [vmem:[#allocation2 + $0x38] sm:$0xf]
  %v1152 = vld [vmem:[#allocation2 + $0x40] sm:$0xf]
  %v1153 = vld [vmem:[#allocation2 + $0x48] sm:$0xf]
  %v1154 = vld [vmem:[#allocation2 + $0x50] sm:$0xf]
  %v1155 = vld [vmem:[#allocation2 + $0x58] sm:$0xf]
  %1166 = vrot.lane.b32.xlu0 %v1146, 98
  %v1167 = vpop.permute.xlu0 %1166
  %1168 = vrot.lane.b32.xlu0 %v1147, 98
  %v1169 = vpop.permute.xlu0 %1168
  %1170 = vrot.lane.b32.xlu0 %v1148, 98
  %v1171 = vpop.permute.xlu0 %1170
  %1172 = vrot.lane.b32.xlu0 %v1149, 98
  %v1173 = vpop.permute.xlu0 %1172
  %1174 = vrot.lane.b32.xlu0 %v1150, 98
  %v1175 = vpop.permute.xlu0 %1174
  %1176 = vrot.lane.b32.xlu0 %v1151, 98
  %v1177 = vpop.permute.xlu0 %1176
  %1178 = vrot.lane.b32.xlu0 %v1152, 98
  %v1179 = vpop.permute.xlu0 %1178
  %1180 = vrot.lane.b32.xlu0 %v1153, 98
  %v1181 = vpop.permute.xlu0 %1180
  %1182 = vrot.lane.b32.xlu0 %v1154, 98
  %v1183 = vpop.permute.xlu0 %1182
  %1184 = vrot.lane.b32.xlu0 %v1155, 98
  %v1185 = vpop.permute.xlu0 %1184
  %vm1186 = vcmask 801792
  %v1187 = vsel %vm1186, %v1167, %v1169
  %v1188 = vsel %vm1186, %v1169, %v1171
  %v1189 = vsel %vm1186, %v1171, %v1173
  %v1190 = vsel %vm1186, %v1173, %v1175
  %v1191 = vsel %vm1186, %v1177, %v1179
  %v1192 = vsel %vm1186, %v1179, %v1181
  %v1193 = vsel %vm1186, %v1181, %v1183
  %v1194 = vsel %vm1186, %v1183, %v1185
  %v1203 = vsel %vm407, %v1187, %v616
  %v1204 = vsel %vm408, %v1188, %v616
  %v1205 = vsel %vm409, %v1189, %v616
  %v1206 = vsel %vm410, %v1190, %v616
  %v1207 = vsel %vm407, %v1191, %v621
  %v1208 = vsel %vm408, %v1192, %v621
  %v1209 = vsel %vm409, %v1193, %v621
  %v1210 = vsel %vm410, %v1194, %v621
  %1211 = vst [vmem:[#allocation3 + $0x200] sm:$0xff] %v1203
  %1212 = vst [vmem:[#allocation3 + $0x208] sm:$0xff] %v1204
  %1213 = vst [vmem:[#allocation3 + $0x210] sm:$0xff] %v1205
  %1214 = vst [vmem:[#allocation3 + $0x218] sm:$0xff] %v1206
  %v1219 = vcombine.low %v1207, %v1208
  %v1220 = vcombine.low %v1209, %v1210
  %v1223 = vmax.f32 %v1070, %v1219
  %v1224 = vmax.f32 %v1071, %v1220
  %v1225 = vld [vmem:[#allocation2 + $0x8] sm:$0xff]
  %v1226 = vld [vmem:[#allocation2 + $0x10] sm:$0xff]
  %v1227 = vld [vmem:[#allocation2 + $0x18] sm:$0xff]
  %v1228 = vld [vmem:[#allocation2 + $0x20] sm:$0xff]
  %v1229 = vld [vmem:[#allocation2 + $0x28] sm:$0xff]
  %v1230 = vld [vmem:[#allocation2 + $0x38] sm:$0xf]
  %v1231 = vld [vmem:[#allocation2 + $0x40] sm:$0xf]
  %v1232 = vld [vmem:[#allocation2 + $0x48] sm:$0xf]
  %v1233 = vld [vmem:[#allocation2 + $0x50] sm:$0xf]
  %v1234 = vld [vmem:[#allocation2 + $0x58] sm:$0xf]
  %1240 = vrot.lane.b32.xlu0 %v1225, 96
  %v1241 = vpop.permute.xlu0 %1240
  %1242 = vrot.lane.b32.xlu0 %v1226, 96
  %v1243 = vpop.permute.xlu0 %1242
  %1244 = vrot.lane.b32.xlu0 %v1227, 96
  %v1245 = vpop.permute.xlu0 %1244
  %1246 = vrot.lane.b32.xlu0 %v1228, 96
  %v1247 = vpop.permute.xlu0 %1246
  %1248 = vrot.lane.b32.xlu0 %v1229, 96
  %v1249 = vpop.permute.xlu0 %1248
  %vm1250 = vcmask 785408
  %v1251 = vsel %vm1250, %v1241, %v1243
  %v1252 = vsel %vm1250, %v1243, %v1245
  %v1253 = vsel %vm1250, %v1245, %v1247
  %v1254 = vsel %vm1250, %v1247, %v1249
  %1259 = vst [vmem:[#allocation3 + $0x220] sm:$0xff] %v1251
  %1260 = vst [vmem:[#allocation3 + $0x228] sm:$0xff] %v1252
  %1261 = vst [vmem:[#allocation3 + $0x230] sm:$0xff] %v1253
  %1262 = vst [vmem:[#allocation3 + $0x238] sm:$0xff] %v1254
  %v1268 = vcombine.low %v1230, %v1231
  %v1269 = vcombine.low %v1232, %v1233
  %1270 = vrot.lane.b32.xlu0 %v1268, 96
  %v1271 = vpop.permute.xlu0 %1270
  %1272 = vrot.lane.b32.xlu0 %v1269, 96
  %v1273 = vpop.permute.xlu0 %1272
  %1274 = vrot.lane.b32.xlu0 %v1234, 96
  %v1275 = vpop.permute.xlu0 %1274
  %v1276 = vrot.slane %v1271, 4
  %v1277 = vrot.slane %v1273, 4
  %v1278 = vrot.slane %v1275, 4
  %v1279 = vsel %vm47, %v1276, %v1277
  %v1280 = vsel %vm1250, %v1271, %v1279
  %v1281 = vsel %vm47, %v1277, %v1278
  %v1282 = vsel %vm1250, %v1273, %v1281
  %v1285 = vmax.f32 %v1223, %v1280
  %v1286 = vmax.f32 %v1224, %v1282
  %v1287 = vld [vmem:[#allocation2 + $0x8] sm:$0xff]
  %v1288 = vld [vmem:[#allocation2 + $0x10] sm:$0xff]
  %v1289 = vld [vmem:[#allocation2 + $0x18] sm:$0xff]
  %v1290 = vld [vmem:[#allocation2 + $0x20] sm:$0xff]
  %v1291 = vld [vmem:[#allocation2 + $0x28] sm:$0xff]
  %v1292 = vld [vmem:[#allocation2 + $0x38] sm:$0xf]
  %v1293 = vld [vmem:[#allocation2 + $0x40] sm:$0xf]
  %v1294 = vld [vmem:[#allocation2 + $0x48] sm:$0xf]
  %v1295 = vld [vmem:[#allocation2 + $0x50] sm:$0xf]
  %v1296 = vld [vmem:[#allocation2 + $0x58] sm:$0xf]
  %1307 = vrot.lane.b32.xlu0 %v1287, 94
  %v1308 = vpop.permute.xlu0 %1307
  %1309 = vrot.lane.b32.xlu0 %v1288, 94
  %v1310 = vpop.permute.xlu0 %1309
  %1311 = vrot.lane.b32.xlu0 %v1289, 94
  %v1312 = vpop.permute.xlu0 %1311
  %1313 = vrot.lane.b32.xlu0 %v1290, 94
  %v1314 = vpop.permute.xlu0 %1313
  %1315 = vrot.lane.b32.xlu0 %v1291, 94
  %v1316 = vpop.permute.xlu0 %1315
  %1317 = vrot.lane.b32.xlu0 %v1292, 94
  %v1318 = vpop.permute.xlu0 %1317
  %1319 = vrot.lane.b32.xlu0 %v1293, 94
  %v1320 = vpop.permute.xlu0 %1319
  %1321 = vrot.lane.b32.xlu0 %v1294, 94
  %v1322 = vpop.permute.xlu0 %1321
  %1323 = vrot.lane.b32.xlu0 %v1295, 94
  %v1324 = vpop.permute.xlu0 %1323
  %1325 = vrot.lane.b32.xlu0 %v1296, 94
  %v1326 = vpop.permute.xlu0 %1325
  %vm1327 = vcmask 769024
  %v1328 = vsel %vm1327, %v1308, %v1310
  %v1329 = vsel %vm1327, %v1310, %v1312
  %v1330 = vsel %vm1327, %v1312, %v1314
  %v1331 = vsel %vm1327, %v1314, %v1316
  %v1332 = vsel %vm1327, %v1318, %v1320
  %v1333 = vsel %vm1327, %v1320, %v1322
  %v1334 = vsel %vm1327, %v1322, %v1324
  %v1335 = vsel %vm1327, %v1324, %v1326
  %v1344 = vsel %vm485, %v1328, %v616
  %v1345 = vsel %vm486, %v1329, %v616
  %v1346 = vsel %vm487, %v1330, %v616
  %v1347 = vsel %vm488, %v1331, %v616
  %v1348 = vsel %vm485, %v1332, %v621
  %v1349 = vsel %vm486, %v1333, %v621
  %v1350 = vsel %vm487, %v1334, %v621
  %v1351 = vsel %vm488, %v1335, %v621
  %1352 = vst [vmem:[#allocation3 + $0x240] sm:$0xff] %v1344
  %1353 = vst [vmem:[#allocation3 + $0x248] sm:$0xff] %v1345
  %1354 = vst [vmem:[#allocation3 + $0x250] sm:$0xff] %v1346
  %1355 = vst [vmem:[#allocation3 + $0x258] sm:$0xff] %v1347
  %v1360 = vcombine.low %v1348, %v1349
  %v1361 = vcombine.low %v1350, %v1351
  %v1364 = vmax.f32 %v1285, %v1360
  %v1365 = vmax.f32 %v1286, %v1361
  %v1366 = vld [vmem:[#allocation2 + $0x8] sm:$0xff]
  %v1367 = vld [vmem:[#allocation2 + $0x10] sm:$0xff]
  %v1368 = vld [vmem:[#allocation2 + $0x18] sm:$0xff]
  %v1369 = vld [vmem:[#allocation2 + $0x20] sm:$0xff]
  %v1370 = vld [vmem:[#allocation2 + $0x28] sm:$0xff]
  %1376 = vrot.lane.b32.xlu0 %v1366, 92
  %v1377 = vpop.permute.xlu0 %1376
  %1378 = vrot.lane.b32.xlu0 %v1367, 92
  %v1379 = vpop.permute.xlu0 %1378
  %1380 = vrot.lane.b32.xlu0 %v1368, 92
  %v1381 = vpop.permute.xlu0 %1380
  %1382 = vrot.lane.b32.xlu0 %v1369, 92
  %v1383 = vpop.permute.xlu0 %1382
  %1384 = vrot.lane.b32.xlu0 %v1370, 92
  %v1385 = vpop.permute.xlu0 %1384
  %vm1386 = vcmask 752640
  %v1387 = vsel %vm1386, %v1377, %v1379
  %v1388 = vsel %vm1386, %v1379, %v1381
  %v1389 = vsel %vm1386, %v1381, %v1383
  %v1390 = vsel %vm1386, %v1383, %v1385
  %v1395 = vsel %vm530, %v1387, 0.0
  %v1396 = vsel %vm531, %v1388, 0.0
  %v1397 = vsel %vm532, %v1389, 0.0
  %v1398 = vsel %vm533, %v1390, 0.0
  %1399 = vst [vmem:[#allocation3 + $0x260] sm:$0xff] %v1395
  %1400 = vst [vmem:[#allocation3 + $0x268] sm:$0xff] %v1396
  %1401 = vst [vmem:[#allocation3 + $0x270] sm:$0xff] %v1397
  %1402 = vst [vmem:[#allocation3 + $0x278] sm:$0xff] %v1398
  %v1403 = vld [vmem:[#allocation2 + $0x8] sm:$0xff]
  %v1404 = vld [vmem:[#allocation2 + $0x10] sm:$0xff]
  %v1405 = vld [vmem:[#allocation2 + $0x18] sm:$0xff]
  %v1406 = vld [vmem:[#allocation2 + $0x20] sm:$0xff]
  %v1407 = vld [vmem:[#allocation2 + $0x28] sm:$0xff]
  %1413 = vrot.lane.b32.xlu0 %v1403, 68
  %v1414 = vpop.permute.xlu0 %1413
  %1415 = vrot.lane.b32.xlu0 %v1404, 68
  %v1416 = vpop.permute.xlu0 %1415
  %1417 = vrot.lane.b32.xlu0 %v1405, 68
  %v1418 = vpop.permute.xlu0 %1417
  %1419 = vrot.lane.b32.xlu0 %v1406, 68
  %v1420 = vpop.permute.xlu0 %1419
  %1421 = vrot.lane.b32.xlu0 %v1407, 68
  %v1422 = vpop.permute.xlu0 %1421
  %v1423 = vsel %vm381, %v1414, %v1416
  %v1424 = vsel %vm381, %v1416, %v1418
  %v1425 = vsel %vm381, %v1418, %v1420
  %v1426 = vsel %vm381, %v1420, %v1422
  %v1431 = vsel %vm362, %v1423, 0.0
  %v1432 = vsel %vm363, %v1424, 0.0
  %v1433 = vsel %vm364, %v1425, 0.0
  %v1434 = vsel %vm365, %v1426, 0.0
  %1435 = vst [vmem:[#allocation3 + $0x280] sm:$0xff] %v1431
  %1436 = vst [vmem:[#allocation3 + $0x288] sm:$0xff] %v1432
  %1437 = vst [vmem:[#allocation3 + $0x290] sm:$0xff] %v1433
  %1438 = vst [vmem:[#allocation3 + $0x298] sm:$0xff] %v1434
  %v1439 = vld [vmem:[#allocation2 + $0x8] sm:$0xff]
  %v1440 = vld [vmem:[#allocation2 + $0x10] sm:$0xff]
  %v1441 = vld [vmem:[#allocation2 + $0x18] sm:$0xff]
  %v1442 = vld [vmem:[#allocation2 + $0x20] sm:$0xff]
  %v1443 = vld [vmem:[#allocation2 + $0x28] sm:$0xff]
  %1449 = vrot.lane.b32.xlu0 %v1439, 66
  %v1450 = vpop.permute.xlu0 %1449
  %1451 = vrot.lane.b32.xlu0 %v1440, 66
  %v1452 = vpop.permute.xlu0 %1451
  %1453 = vrot.lane.b32.xlu0 %v1441, 66
  %v1454 = vpop.permute.xlu0 %1453
  %1455 = vrot.lane.b32.xlu0 %v1442, 66
  %v1456 = vpop.permute.xlu0 %1455
  %1457 = vrot.lane.b32.xlu0 %v1443, 66
  %v1458 = vpop.permute.xlu0 %1457
  %v1459 = vsel %vm426, %v1450, %v1452
  %v1460 = vsel %vm426, %v1452, %v1454
  %v1461 = vsel %vm426, %v1454, %v1456
  %v1462 = vsel %vm426, %v1456, %v1458
  %v1467 = vsel %vm407, %v1459, 0.0
  %v1468 = vsel %vm408, %v1460, 0.0
  %v1469 = vsel %vm409, %v1461, 0.0
  %v1470 = vsel %vm410, %v1462, 0.0
  %1471 = vst [vmem:[#allocation3 + $0x2a0] sm:$0xff] %v1467
  %1472 = vst [vmem:[#allocation3 + $0x2a8] sm:$0xff] %v1468
  %1473 = vst [vmem:[#allocation3 + $0x2b0] sm:$0xff] %v1469
  %1474 = vst [vmem:[#allocation3 + $0x2b8] sm:$0xff] %v1470
  %v1475 = vld [vmem:[#allocation2 + $0x8] sm:$0xff]
  %v1476 = vld [vmem:[#allocation2 + $0x10] sm:$0xff]
  %v1477 = vld [vmem:[#allocation2 + $0x18] sm:$0xff]
  %v1478 = vld [vmem:[#allocation2 + $0x20] sm:$0xff]
  %v1479 = vld [vmem:[#allocation2 + $0x28] sm:$0xff]
  %1485 = vrot.lane.b32.xlu0 %v1475, 64
  %v1486 = vpop.permute.xlu0 %1485
  %1487 = vrot.lane.b32.xlu0 %v1476, 64
  %v1488 = vpop.permute.xlu0 %1487
  %1489 = vrot.lane.b32.xlu0 %v1477, 64
  %v1490 = vpop.permute.xlu0 %1489
  %1491 = vrot.lane.b32.xlu0 %v1478, 64
  %v1492 = vpop.permute.xlu0 %1491
  %1493 = vrot.lane.b32.xlu0 %v1479, 64
  %v1494 = vpop.permute.xlu0 %1493
  %v1495 = vsel %vm463, %v1486, %v1488
  %v1496 = vsel %vm463, %v1488, %v1490
  %v1497 = vsel %vm463, %v1490, %v1492
  %v1498 = vsel %vm463, %v1492, %v1494
  %1503 = vst [vmem:[#allocation3 + $0x2c0] sm:$0xff] %v1495
  %1504 = vst [vmem:[#allocation3 + $0x2c8] sm:$0xff] %v1496
  %1505 = vst [vmem:[#allocation3 + $0x2d0] sm:$0xff] %v1497
  %1506 = vst [vmem:[#allocation3 + $0x2d8] sm:$0xff] %v1498
  %v1507 = vld [vmem:[#allocation2 + $0x8] sm:$0xff]
  %v1508 = vld [vmem:[#allocation2 + $0x10] sm:$0xff]
  %v1509 = vld [vmem:[#allocation2 + $0x18] sm:$0xff]
  %v1510 = vld [vmem:[#allocation2 + $0x20] sm:$0xff]
  %v1511 = vld [vmem:[#allocation2 + $0x28] sm:$0xff]
  %1517 = vrot.lane.b32.xlu0 %v1507, 62
  %v1518 = vpop.permute.xlu0 %1517
  %1519 = vrot.lane.b32.xlu0 %v1508, 62
  %v1520 = vpop.permute.xlu0 %1519
  %1521 = vrot.lane.b32.xlu0 %v1509, 62
  %v1522 = vpop.permute.xlu0 %1521
  %1523 = vrot.lane.b32.xlu0 %v1510, 62
  %v1524 = vpop.permute.xlu0 %1523
  %1525 = vrot.lane.b32.xlu0 %v1511, 62
  %v1526 = vpop.permute.xlu0 %1525
  %v1527 = vsel %vm504, %v1518, %v1520
  %v1528 = vsel %vm504, %v1520, %v1522
  %v1529 = vsel %vm504, %v1522, %v1524
  %v1530 = vsel %vm504, %v1524, %v1526
  %v1535 = vsel %vm485, %v1527, 0.0
  %v1536 = vsel %vm486, %v1528, 0.0
  %v1537 = vsel %vm487, %v1529, 0.0
  %v1538 = vsel %vm488, %v1530, 0.0
  %1539 = vst [vmem:[#allocation3 + $0x2e0] sm:$0xff] %v1535
  %1540 = vst [vmem:[#allocation3 + $0x2e8] sm:$0xff] %v1536
  %1541 = vst [vmem:[#allocation3 + $0x2f0] sm:$0xff] %v1537
  %1542 = vst [vmem:[#allocation3 + $0x2f8] sm:$0xff] %v1538
  %v1543 = vld [vmem:[#allocation2 + $0x8] sm:$0xff]
  %v1544 = vld [vmem:[#allocation2 + $0x10] sm:$0xff]
  %v1545 = vld [vmem:[#allocation2 + $0x18] sm:$0xff]
  %v1546 = vld [vmem:[#allocation2 + $0x20] sm:$0xff]
  %v1547 = vld [vmem:[#allocation2 + $0x28] sm:$0xff]
  %1553 = vrot.lane.b32.xlu0 %v1543, 60
  %v1554 = vpop.permute.xlu0 %1553
  %1555 = vrot.lane.b32.xlu0 %v1544, 60
  %v1556 = vpop.permute.xlu0 %1555
  %1557 = vrot.lane.b32.xlu0 %v1545, 60
  %v1558 = vpop.permute.xlu0 %1557
  %1559 = vrot.lane.b32.xlu0 %v1546, 60
  %v1560 = vpop.permute.xlu0 %1559
  %1561 = vrot.lane.b32.xlu0 %v1547, 60
  %v1562 = vpop.permute.xlu0 %1561
  %v1563 = vsel %vm549, %v1554, %v1556
  %v1564 = vsel %vm549, %v1556, %v1558
  %v1565 = vsel %vm549, %v1558, %v1560
  %v1566 = vsel %vm549, %v1560, %v1562
  %v1571 = vsel %vm530, %v1563, 0.0
  %v1572 = vsel %vm531, %v1564, 0.0
  %v1573 = vsel %vm532, %v1565, 0.0
  %v1574 = vsel %vm533, %v1566, 0.0
  %1575 = vst [vmem:[#allocation3 + $0x300] sm:$0xff] %v1571
  %1576 = vst [vmem:[#allocation3 + $0x308] sm:$0xff] %v1572
  %1577 = vst [vmem:[#allocation3 + $0x310] sm:$0xff] %v1573
  %1578 = vst [vmem:[#allocation3 + $0x318] sm:$0xff] %v1574
  %v1581 = vcombine.high %v1364, %v1364
  %v1582 = vcombine.high %v1365, %v1365
  %1585 = vst [vmem:[#allocation3 + $0x320] sm:$0xf] %v1364
  %1586 = vst [vmem:[#allocation3 + $0x328] sm:$0xf] %v1581
  %1587 = vst [vmem:[#allocation3 + $0x330] sm:$0xf] %v1365
  %1588 = vst [vmem:[#allocation3 + $0x338] sm:$0xf] %v1582
  %v1589 = vld [vmem:[%s3] sm:$0xff]
  %v1590 = vld [vmem:[%s3 + $0x8] sm:$0xff]
  %v1591 = vld [vmem:[%s3 + $0x10] sm:$0xff]
  %v1592 = vld [vmem:[%s3 + $0x18] sm:$0xff]
  %v1593 = vld [vmem:[#allocation3] sm:$0xff]
  %v1594 = vld [vmem:[#allocation3 + $0x8] sm:$0xff]
  %v1595 = vld [vmem:[#allocation3 + $0x10] sm:$0xff]
  %v1596 = vld [vmem:[#allocation3 + $0x18] sm:$0xff]
  %v1597 = vld [vmem:[#allocation3 + $0x20] sm:$0xff]
  %v1598 = vld [vmem:[#allocation3 + $0x28] sm:$0xff]
  %v1599 = vld [vmem:[#allocation3 + $0x30] sm:$0xff]
  %v1600 = vld [vmem:[#allocation3 + $0x38] sm:$0xff]
  %v1601 = vld [vmem:[#allocation3 + $0x40] sm:$0xff]
  %v1602 = vld [vmem:[#allocation3 + $0x48] sm:$0xff]
  %v1603 = vld [vmem:[#allocation3 + $0x50] sm:$0xff]
  %v1604 = vld [vmem:[#allocation3 + $0x58] sm:$0xff]
  %v1605 = vld [vmem:[#allocation3 + $0x60] sm:$0xff]
  %v1606 = vld [vmem:[#allocation3 + $0x68] sm:$0xff]
  %v1607 = vld [vmem:[#allocation3 + $0x70] sm:$0xff]
  %v1608 = vld [vmem:[#allocation3 + $0x78] sm:$0xff]
  %v1609 = vld [vmem:[#allocation3 + $0x80] sm:$0xff]
  %v1610 = vld [vmem:[#allocation3 + $0x88] sm:$0xff]
  %v1611 = vld [vmem:[#allocation3 + $0x90] sm:$0xff]
  %v1612 = vld [vmem:[#allocation3 + $0x98] sm:$0xff]
  %v1613 = vld [vmem:[#allocation3 + $0xa0] sm:$0xff]
  %v1614 = vld [vmem:[#allocation3 + $0xa8] sm:$0xff]
  %v1615 = vld [vmem:[#allocation3 + $0xb0] sm:$0xff]
  %v1616 = vld [vmem:[#allocation3 + $0xb8] sm:$0xff]
  %v1617 = vld [vmem:[#allocation3 + $0xc0] sm:$0xff]
  %v1618 = vld [vmem:[#allocation3 + $0xc8] sm:$0xff]
  %v1619 = vld [vmem:[#allocation3 + $0xd0] sm:$0xff]
  %v1620 = vld [vmem:[#allocation3 + $0xd8] sm:$0xff]
  %v1621 = vld [vmem:[#allocation3 + $0xe0] sm:$0xff]
  %v1622 = vld [vmem:[#allocation3 + $0xe8] sm:$0xff]
  %v1623 = vld [vmem:[#allocation3 + $0xf0] sm:$0xff]
  %v1624 = vld [vmem:[#allocation3 + $0xf8] sm:$0xff]
  %v1625 = vld [vmem:[#allocation3 + $0x100] sm:$0xff]
  %v1626 = vld [vmem:[#allocation3 + $0x108] sm:$0xff]
  %v1627 = vld [vmem:[#allocation3 + $0x110] sm:$0xff]
  %v1628 = vld [vmem:[#allocation3 + $0x118] sm:$0xff]
  %v1629 = vld [vmem:[#allocation3 + $0x120] sm:$0xff]
  %v1630 = vld [vmem:[#allocation3 + $0x128] sm:$0xff]
  %v1631 = vld [vmem:[#allocation3 + $0x130] sm:$0xff]
  %v1632 = vld [vmem:[#allocation3 + $0x138] sm:$0xff]
  %v1633 = vld [vmem:[#allocation3 + $0x140] sm:$0xff]
  %v1634 = vld [vmem:[#allocation3 + $0x148] sm:$0xff]
  %v1635 = vld [vmem:[#allocation3 + $0x150] sm:$0xff]
  %v1636 = vld [vmem:[#allocation3 + $0x158] sm:$0xff]
  %v1637 = vld [vmem:[#allocation3 + $0x160] sm:$0xff]
  %v1638 = vld [vmem:[#allocation3 + $0x168] sm:$0xff]
  %v1639 = vld [vmem:[#allocation3 + $0x170] sm:$0xff]
  %v1640 = vld [vmem:[#allocation3 + $0x178] sm:$0xff]
  %v1641 = vld [vmem:[#allocation3 + $0x180] sm:$0xff]
  %v1642 = vld [vmem:[#allocation3 + $0x188] sm:$0xff]
  %v1643 = vld [vmem:[#allocation3 + $0x190] sm:$0xff]
  %v1644 = vld [vmem:[#allocation3 + $0x198] sm:$0xff]
  %v1645 = vld [vmem:[#allocation3 + $0x1a0] sm:$0xff]
  %v1646 = vld [vmem:[#allocation3 + $0x1a8] sm:$0xff]
  %v1647 = vld [vmem:[#allocation3 + $0x1b0] sm:$0xff]
  %v1648 = vld [vmem:[#allocation3 + $0x1b8] sm:$0xff]
  %v1649 = vld [vmem:[#allocation3 + $0x1c0] sm:$0xff]
  %v1650 = vld [vmem:[#allocation3 + $0x1c8] sm:$0xff]
  %v1651 = vld [vmem:[#allocation3 + $0x1d0] sm:$0xff]
  %v1652 = vld [vmem:[#allocation3 + $0x1d8] sm:$0xff]
  %v1653 = vld [vmem:[#allocation3 + $0x1e0] sm:$0xff]
  %v1654 = vld [vmem:[#allocation3 + $0x1e8] sm:$0xff]
  %v1655 = vld [vmem:[#allocation3 + $0x1f0] sm:$0xff]
  %v1656 = vld [vmem:[#allocation3 + $0x1f8] sm:$0xff]
  %v1657 = vld [vmem:[#allocation3 + $0x200] sm:$0xff]
  %v1658 = vld [vmem:[#allocation3 + $0x208] sm:$0xff]
  %v1659 = vld [vmem:[#allocation3 + $0x210] sm:$0xff]
  %v1660 = vld [vmem:[#allocation3 + $0x218] sm:$0xff]
  %v1661 = vld [vmem:[#allocation3 + $0x220] sm:$0xff]
  %v1662 = vld [vmem:[#allocation3 + $0x228] sm:$0xff]
  %v1663 = vld [vmem:[#allocation3 + $0x230] sm:$0xff]
  %v1664 = vld [vmem:[#allocation3 + $0x238] sm:$0xff]
  %v1665 = vld [vmem:[#allocation3 + $0x240] sm:$0xff]
  %v1666 = vld [vmem:[#allocation3 + $0x248] sm:$0xff]
  %v1667 = vld [vmem:[#allocation3 + $0x250] sm:$0xff]
  %v1668 = vld [vmem:[#allocation3 + $0x258] sm:$0xff]
  %v1669 = vld [vmem:[#allocation3 + $0x260] sm:$0xff]
  %v1670 = vld [vmem:[#allocation3 + $0x268] sm:$0xff]
  %v1671 = vld [vmem:[#allocation3 + $0x270] sm:$0xff]
  %v1672 = vld [vmem:[#allocation3 + $0x278] sm:$0xff]
  %v1673 = vld [vmem:[#allocation3 + $0x280] sm:$0xff]
  %v1674 = vld [vmem:[#allocation3 + $0x288] sm:$0xff]
  %v1675 = vld [vmem:[#allocation3 + $0x290] sm:$0xff]
  %v1676 = vld [vmem:[#allocation3 + $0x298] sm:$0xff]
  %v1677 = vld [vmem:[#allocation3 + $0x2a0] sm:$0xff]
  %v1678 = vld [vmem:[#allocation3 + $0x2a8] sm:$0xff]
  %v1679 = vld [vmem:[#allocation3 + $0x2b0] sm:$0xff]
  %v1680 = vld [vmem:[#allocation3 + $0x2b8] sm:$0xff]
  %v1681 = vld [vmem:[#allocation3 + $0x2c0] sm:$0xff]
  %v1682 = vld [vmem:[#allocation3 + $0x2c8] sm:$0xff]
  %v1683 = vld [vmem:[#allocation3 + $0x2d0] sm:$0xff]
  %v1684 = vld [vmem:[#allocation3 + $0x2d8] sm:$0xff]
  %v1685 = vld [vmem:[#allocation3 + $0x2e0] sm:$0xff]
  %v1686 = vld [vmem:[#allocation3 + $0x2e8] sm:$0xff]
  %v1687 = vld [vmem:[#allocation3 + $0x2f0] sm:$0xff]
  %v1688 = vld [vmem:[#allocation3 + $0x2f8] sm:$0xff]
  %v1689 = vld [vmem:[#allocation3 + $0x300] sm:$0xff]
  %v1690 = vld [vmem:[#allocation3 + $0x308] sm:$0xff]
  %v1691 = vld [vmem:[#allocation3 + $0x310] sm:$0xff]
  %v1692 = vld [vmem:[#allocation3 + $0x318] sm:$0xff]
  %v1693 = vld [vmem:[#allocation3 + $0x320] sm:$0xf]
  %v1694 = vld [vmem:[#allocation3 + $0x328] sm:$0xf]
  %v1695 = vld [vmem:[#allocation3 + $0x330] sm:$0xf]
  %v1696 = vld [vmem:[#allocation3 + $0x338] sm:$0xf]
  %v1697 = vld [vmem:[%s4] sm:$0xff]
  %v1698 = vld [vmem:[%s4 + $0x8] sm:$0xff]
  %1700 = vset.pattern.permute.xlu0 0
  %1701 = vperm.xlu0 %1700, %v1697
  %v1702 = vpop.permute.xlu0 %1701
  %1705 = vset.pattern.permute.xlu0 0
  %1706 = vperm.xlu0 %1705, %v1698
  %v1707 = vpop.permute.xlu0 %1706
  %vm1709 = vcmask 621568
  %v1711 = vsel %vm1709, %v1590, 0
  %v1714 = vsel %vm1709, %v1592, 0
  %v1717 = vsel %vm47, %v1693, 0
  %v1720 = vsel %vm47, %v1694, 0
  %v1723 = vsel %vm47, %v1695, 0
  %v1726 = vsel %vm47, %v1696, 0
  %1728 = vmatprep.subr.mxu0 %v1594
  %1729 = vmatpush1.msra.mxu0 %v1593
  %1730 = vmatprep.subr.mxu0 %v1598
  %1731 = vmatpush1.msra.mxu0 %v1597
  %1732 = vmatprep.subr.mxu0 %v1602
  %1733 = vmatpush1.msra.mxu0 %v1601
  %1734 = vmatprep.subr.mxu0 %v1606
  %1735 = vmatpush1.msra.mxu0 %v1605
  %1736 = vmatprep.subr.mxu0 %v1610
  %1737 = vmatpush1.msra.mxu0 %v1609
  %1738 = vmatprep.subr.mxu0 %v1614
  %1739 = vmatpush1.msra.mxu0 %v1613
  %1740 = vmatprep.subr.mxu0 %v1618
  %1741 = vmatpush1.msra.mxu0 %v1617
  %1742 = vmatprep.subr.mxu0 %v1622
  %1743 = vmatpush1.msra.mxu0 %v1621
  %1744 = vmatprep.subr.mxu0 %v1626
  %1745 = vmatpush1.msra.mxu0 %v1625
  %1746 = vmatprep.subr.mxu0 %v1630
  %1747 = vmatpush1.msra.mxu0 %v1629
  %1748 = vmatprep.subr.mxu0 %v1634
  %1749 = vmatpush1.msra.mxu0 %v1633
  %1750 = vmatprep.subr.mxu0 %v1638
  %1751 = vmatpush1.msra.mxu0 %v1637
  %1752 = vmatprep.subr.mxu0 %v1642
  %1753 = vmatpush1.msra.mxu0 %v1641
  %1754 = vmatprep.subr.mxu0 %v1646
  %1755 = vmatpush1.msra.mxu0 %v1645
  %1756 = vmatprep.subr.mxu0 %v1650
  %1757 = vmatpush1.msra.mxu0 %v1649
  %1758 = vmatprep.subr.mxu0 %v1654
  %1759 = vmatpush1.msra.mxu0 %v1653
  %1760 = vmatprep.subr.mxu0 %v1658
  %1761 = vmatpush1.msra.mxu0 %v1657
  %1762 = vmatprep.subr.mxu0 %v1662
  %1763 = vmatpush1.msra.mxu0 %v1661
  %1764 = vmatprep.subr.mxu0 %v1666
  %1765 = vmatpush1.msra.mxu0 %v1665
  %1766 = vmatprep.subr.mxu0 %v1670
  %1767 = vmatpush1.msra.mxu0 %v1669
  %1768 = vmatprep.subr.mxu0 %v1674
  %1769 = vmatpush1.msra.mxu0 %v1673
  %1770 = vmatprep.subr.mxu0 %v1678
  %1771 = vmatpush1.msra.mxu0 %v1677
  %1772 = vmatprep.subr.mxu0 %v1682
  %1773 = vmatpush1.msra.mxu0 %v1681
  %1774 = vmatprep.subr.mxu0 %v1686
  %1775 = vmatpush1.msra.mxu0 %v1685
  %1776 = vmatprep.subr.mxu0 %v1690
  %1777 = vmatpush1.msra.mxu0 %v1689
  %1778 = vmatprep.subr.mxu0 %v1720
  %1779 = vmatpush1.msra.mxu0 %v1717
  %1780 = vmatprep.subr.mxu0 0.0
  %1781 = vmatpush1.msra.mxu0 0.0
  %1782 = vmatprep.subr.mxu0 0.0
  %1783 = vmatpush1.msra.mxu0 0.0
  %1784 = vmatprep.subr.mxu0 0.0
  %1785 = vmatpush1.msra.mxu0 0.0
  %1786 = vmatprep.subr.mxu0 0.0
  %1787 = vmatpush1.msra.mxu0 0.0
  %1788 = vmatprep.subr.mxu0 0.0
  %1789 = vmatpush1.msra.mxu0 0.0
  %1790 = vmatprep.subr.mxu0 0.0
  %1791 = vmatpush1.msra.mxu0 0.0
  %1792 = vmatprep.mubr.f32.mxu0 %v1711
  %1793 = vmatmul.mubr.f32.gmra.mrb[0].mxu0 %v1589
  %v1794 = vpop.f32.mrb[0].mxu0
  %v1795 = vadd.f32 %v1702, %v1794
  %v1796 = vpop.f32.mrb[0].mxu0
  %v1797 = vadd.f32 %v1702, %v1796
  %1798 = vmatprep.mubr.f32.mxu0 %v1714
  %1799 = vmatmul.mubr.f32.gmra.mrb[0].mxu0 %v1591
  %v1800 = vpop.f32.mrb[0].mxu0
  %v1801 = vadd.f32 %v1707, %v1800
  %v1802 = vpop.f32.mrb[0].mxu0
  %v1803 = vadd.f32 %v1707, %v1802
  %1804 = vdwg.mxu0
  %1805 = vmatprep.subr.mxu0 %v1596
  %1806 = vmatpush1.msra.mxu0 %v1595
  %1807 = vmatprep.subr.mxu0 %v1600
  %1808 = vmatpush1.msra.mxu0 %v1599
  %1809 = vmatprep.subr.mxu0 %v1604
  %1810 = vmatpush1.msra.mxu0 %v1603
  %1811 = vmatprep.subr.mxu0 %v1608
  %1812 = vmatpush1.msra.mxu0 %v1607
  %1813 = vmatprep.subr.mxu0 %v1612
  %1814 = vmatpush1.msra.mxu0 %v1611
  %1815 = vmatprep.subr.mxu0 %v1616
  %1816 = vmatpush1.msra.mxu0 %v1615
  %1817 = vmatprep.subr.mxu0 %v1620
  %1818 = vmatpush1.msra.mxu0 %v1619
  %1819 = vmatprep.subr.mxu0 %v1624
  %1820 = vmatpush1.msra.mxu0 %v1623
  %1821 = vmatprep.subr.mxu0 %v1628
  %1822 = vmatpush1.msra.mxu0 %v1627
  %1823 = vmatprep.subr.mxu0 %v1632
  %1824 = vmatpush1.msra.mxu0 %v1631
  %1825 = vmatprep.subr.mxu0 %v1636
  %1826 = vmatpush1.msra.mxu0 %v1635
  %1827 = vmatprep.subr.mxu0 %v1640
  %1828 = vmatpush1.msra.mxu0 %v1639
  %1829 = vmatprep.subr.mxu0 %v1644
  %1830 = vmatpush1.msra.mxu0 %v1643
  %1831 = vmatprep.subr.mxu0 %v1648
  %1832 = vmatpush1.msra.mxu0 %v1647
  %1833 = vmatprep.subr.mxu0 %v1652
  %1834 = vmatpush1.msra.mxu0 %v1651
  %1835 = vmatprep.subr.mxu0 %v1656
  %1836 = vmatpush1.msra.mxu0 %v1655
  %1837 = vmatprep.subr.mxu0 %v1660
  %1838 = vmatpush1.msra.mxu0 %v1659
  %1839 = vmatprep.subr.mxu0 %v1664
  %1840 = vmatpush1.msra.mxu0 %v1663
  %1841 = vmatprep.subr.mxu0 %v1668
  %1842 = vmatpush1.msra.mxu0 %v1667
  %1843 = vmatprep.subr.mxu0 %v1672
  %1844 = vmatpush1.msra.mxu0 %v1671
  %1845 = vmatprep.subr.mxu0 %v1676
  %1846 = vmatpush1.msra.mxu0 %v1675
  %1847 = vmatprep.subr.mxu0 %v1680
  %1848 = vmatpush1.msra.mxu0 %v1679
  %1849 = vmatprep.subr.mxu0 %v1684
  %1850 = vmatpush1.msra.mxu0 %v1683
  %1851 = vmatprep.subr.mxu0 %v1688
  %1852 = vmatpush1.msra.mxu0 %v1687
  %1853 = vmatprep.subr.mxu0 %v1692
  %1854 = vmatpush1.msra.mxu0 %v1691
  %1855 = vmatprep.subr.mxu0 %v1726
  %1856 = vmatpush1.msra.mxu0 %v1723
  %1857 = vmatprep.subr.mxu0 0.0
  %1858 = vmatpush1.msra.mxu0 0.0
  %1859 = vmatprep.subr.mxu0 0.0
  %1860 = vmatpush1.msra.mxu0 0.0
  %1861 = vmatprep.subr.mxu0 0.0
  %1862 = vmatpush1.msra.mxu0 0.0
  %1863 = vmatprep.subr.mxu0 0.0
  %1864 = vmatpush1.msra.mxu0 0.0
  %1865 = vmatprep.subr.mxu0 0.0
  %1866 = vmatpush1.msra.mxu0 0.0
  %1867 = vmatprep.subr.mxu0 0.0
  %1868 = vmatpush1.msra.mxu0 0.0
  %1869 = vmatprep.mubr.f32.mxu0 %v1711
  %1870 = vmatmul.mubr.f32.gmra.mrb[0].mxu0 %v1589
  %v1871 = vpop.f32.mrb[0].mxu0
  %v1872 = vadd.f32 %v1702, %v1871
  %v1873 = vpop.f32.mrb[0].mxu0
  %v1874 = vadd.f32 %v1702, %v1873
  %1875 = vmatprep.mubr.f32.mxu0 %v1714
  %1876 = vmatmul.mubr.f32.gmra.mrb[0].mxu0 %v1591
  %v1877 = vpop.f32.mrb[0].mxu0
  %v1878 = vadd.f32 %v1707, %v1877
  %v1879 = vpop.f32.mrb[0].mxu0
  %v1880 = vadd.f32 %v1707, %v1879
  %1881 = vdwg.mxu0
  %v1882 = vmax.f32 %v1795, 0.0
  %v1883 = vmax.f32 %v1797, 0.0
  %v1884 = vmax.f32 %v1872, 0.0
  %v1885 = vmax.f32 %v1874, 0.0
  %v1886 = vmax.f32 %v1801, 0.0
  %v1887 = vmax.f32 %v1803, 0.0
  %v1888 = vmax.f32 %v1878, 0.0
  %v1889 = vmax.f32 %v1880, 0.0
  %1890 = vst [vmem:[%s5 + $0x20] sm:$0xff] %v1882
  %1891 = vst [vmem:[%s5 + $0x28] sm:$0xff] %v1883
  %1892 = vst [vmem:[%s5 + $0x30] sm:$0xff] %v1884
  %1893 = vst [vmem:[%s5 + $0x38] sm:$0xff] %v1885
  %1894 = vst [vmem:[%s5 + $0x40] sm:$0xff] %v1886
  %1895 = vst [vmem:[%s5 + $0x48] sm:$0xff] %v1887
  %1896 = vst [vmem:[%s5 + $0x50] sm:$0xff] %v1888
  %1897 = vst [vmem:[%s5 + $0x58] sm:$0xff] %v1889
  // Predicated region
  $region22: #{_inception_pallas.1} parent=0 // pred_check
    _
  $region23: #{_inception_pallas.1} parent=0 // pred_check_branch
    %1899 = sbr.rel (0) target = $region25
  $region24: #{_inception_pallas.1} parent=0 // pred_region
    _
  $region25: #{_inception_pallas.1} parent=0 // pred_fallthru
    _
  // Predicated region
  $region26: #{_inception_pallas.1} parent=0 // pred_check
    _
  $region27: #{_inception_pallas.1} parent=0 // pred_check_branch
    %1901 = sbr.rel (0) target = $region29
  $region28: #{_inception_pallas.1} parent=0 // pred_region
    _
  $region29: #{_inception_pallas.1} parent=0 // pred_fallthru
    _

</llo_original>
